<compile_context>
chip_gen: v7x
topology: tpu7x:2x2x1
jax: 0.10.0
libtpu: 0.0.40
codegen_flags: <defaults>
</compile_context>

<pallas_src>
import numpy as np
import jax
import jax.numpy as jnp
from jax.experimental import pallas as pl
from jax.experimental.pallas import tpu as pltpu


def _ortho_dft_mats(n):
    """Ortho DFT matrix F[k, m] = exp(-2*pi*i*k*m/n)/sqrt(n) as (Re, Im)."""
    k = np.arange(n)
    ang = -2.0 * np.pi * np.outer(k, k) / n
    s = 1.0 / np.sqrt(n)
    return (np.cos(ang) * s).astype(np.float32), (np.sin(ang) * s).astype(np.float32)


def _dc_kernel(x_ref, ksr_ref, ksi_ref, m_ref, fh_ref, fwr_ref, fwi_ref, o_ref):
    # x_ref   : [bb, 1, H, W]  predicted image chunk (channel 0 via BlockSpec)
    # ksr_ref : [bb*H, W]      measured k-space, real part
    # ksi_ref : [bb*H, W]      measured k-space, imag part
    # m_ref   : [bb*H, W]      sampling mask
    # fh_ref  : [2H, H]        [Fh_re ; Fh_im]  (ortho DFT along H, sublane-stacked)
    # fwr_ref : [W, W]         Fw_re            (ortho DFT along W)
    # fwi_ref : [W, W]         Fw_im
    # o_ref   : [bb*H, W]      real part of the data-consistent image
    bb = x_ref.shape[0]
    H = fh_ref.shape[1]

    fh = fh_ref[...]
    fwr = fwr_ref[...]
    fwi = fwi_ref[...]

    # ---- row FFT of the (real) images: two chunk-wide matmuls --------------
    xs = [x_ref[b, 0, :, :].astype(jnp.float32) for b in range(bb)]
    x_all = xs[0] if bb == 1 else jnp.concatenate(xs, axis=0)            # [bb*H, W]
    cr_all = jnp.dot(x_all, fwr, preferred_element_type=jnp.float32)     # Re(x @ Fw)
    ci_all = jnp.dot(x_all, fwi, preferred_element_type=jnp.float32)     # Im(x @ Fw)

    # ---- per image: column FFT, DC blend, inverse column FFT ---------------
    zr_list, zi_list = [], []
    for b in range(bb):
        lo, hi = b * H, (b + 1) * H
        cr = cr_all[lo:hi]
        ci = ci_all[lo:hi]

        # K = Fh @ C : stacked operator gives [Fh_re@Cx ; Fh_im@Cx].
        pr = jnp.dot(fh, cr, preferred_element_type=jnp.float32)         # [2H, W]
        pi_ = jnp.dot(fh, ci, preferred_element_type=jnp.float32)        # [2H, W]
        kr = pr[:H] - pi_[H:]                                            # Re(K)
        ki = pi_[:H] + pr[H:]                                            # Im(K)

        # Data-consistency blend: U = K + m * (KS - K).
        m = m_ref[lo:hi, :]
        ur = kr + m * (ksr_ref[lo:hi, :] - kr)
        ui = ki + m * (ksi_ref[lo:hi, :] - ki)

        # Z' = conj(Fh) @ U.
        qr = jnp.dot(fh, ur, preferred_element_type=jnp.float32)         # [2H, W]
        qi = jnp.dot(fh, ui, preferred_element_type=jnp.float32)         # [2H, W]
        zr_list.append(qr[:H] + qi[H:])                                  # Re(Z')
        zi_list.append(qi[:H] - qr[H:])                                  # Im(Z')

    zr_all = zr_list[0] if bb == 1 else jnp.concatenate(zr_list, axis=0)  # [bb*H, W]
    zi_all = zi_list[0] if bb == 1 else jnp.concatenate(zi_list, axis=0)  # [bb*H, W]

    # ---- inverse row FFT, real part only: two chunk-wide matmuls -----------
    # Re(Z' @ conj(Fw)) = Zr' @ Fw_re + Zi' @ Fw_im
    out = (jnp.dot(zr_all, fwr, preferred_element_type=jnp.float32)
           + jnp.dot(zi_all, fwi, preferred_element_type=jnp.float32))
    o_ref[...] = out.astype(o_ref.dtype)


def _vmem_bytes(bb, H, W):
    f32 = 4
    io = 2 * f32 * bb * H * W * 5                 # x, ks_re, ks_im, mask, out (double buffered)
    consts = 2 * f32 * (2 * H * H + 2 * W * W)    # fh, fwr, fwi (double buffered)
    temps = f32 * (7 * bb * H * W + 8 * H * W)    # x_all, c*, z*, out + per-image temporaries
    return io + consts + temps


def _pick_block_batch(B, H, W, requested):
    if requested is not None:
        if requested < 1 or B % requested != 0:
            raise ValueError("block_batch must be a positive divisor of the batch")
        return requested
    if H % 8 != 0:
        # Chunked row blocks would put a non-multiple-of-8 extent in the
        # sublane dim of the k-space / output blocks; use a single step.
        return B
    budget = 16 * 1024 * 1024
    bb = 1
    for d in range(1, B + 1):
        if B % d == 0 and d <= 8 and _vmem_bytes(d, H, W) <= budget:
            bb = d
    return bb


def data_consistency_layer(predicted_img, us_kspace, us_mask, *, block_batch=None):
    """predicted_img: [B, C, H, W] (only channel 0 used, as in the module);
    us_kspace: [B, H, W, 2]; us_mask: [B, H, W].  Returns [B, 1, H, W] f32."""
    B, C, H, W = predicted_img.shape
    assert us_kspace.shape == (B, H, W, 2)
    assert us_mask.shape == (B, H, W)

    bb = _pick_block_batch(B, H, W, block_batch)
    grid = (B // bb,)

    # Cheap wrapper relayouts (XLA slices/reshapes): separate lane-dense
    # real / imag k-space planes and the mask, all [B*H, W].
    ksr = us_kspace[..., 0].astype(jnp.float32).reshape(B * H, W)
    ksi = us_kspace[..., 1].astype(jnp.float32).reshape(B * H, W)
    m2 = us_mask.astype(jnp.float32).reshape(B * H, W)

    # Ortho DFT operators (host-side constants).
    fhr, fhi = _ortho_dft_mats(H)
    fwr_np, fwi_np = _ortho_dft_mats(W)
    fh = jnp.asarray(np.concatenate([fhr, fhi], axis=0))     # [2H, H]  (sublane stacked)
    fwr = jnp.asarray(fwr_np)                                 # [W, W]
    fwi = jnp.asarray(fwi_np)                                 # [W, W]

    macs = B * (4 * H * W * W + 8 * H * H * W)
    cost = pl.CostEstimate(
        flops=2 * macs,
        transcendentals=0,
        bytes_accessed=4 * (5 * B * H * W + 2 * H * H + 2 * W * W),
    )
    vmem_limit = int(min(64 * 2**20, max(32 * 2**20, 1.5 * _vmem_bytes(bb, H, W))))

    out = pl.pallas_call(
        _dc_kernel,
        out_shape=jax.ShapeDtypeStruct((B * H, W), jnp.float32),
        grid=grid,
        in_specs=[
            pl.BlockSpec((bb, 1, H, W), lambda i: (i, 0, 0, 0)),   # predicted_img, ch 0
            pl.BlockSpec((bb * H, W), lambda i: (i, 0)),           # k-space real
            pl.BlockSpec((bb * H, W), lambda i: (i, 0)),           # k-space imag
            pl.BlockSpec((bb * H, W), lambda i: (i, 0)),           # mask
            pl.BlockSpec((2 * H, H), lambda i: (0, 0)),            # Fh stacked
            pl.BlockSpec((W, W), lambda i: (0, 0)),                # Fw_re
            pl.BlockSpec((W, W), lambda i: (0, 0)),                # Fw_im
        ],
        out_specs=pl.BlockSpec((bb * H, W), lambda i: (i, 0)),
        compiler_params=pltpu.CompilerParams(
            dimension_semantics=("parallel",),
            vmem_limit_bytes=vmem_limit,
        ),
        cost_estimate=cost,
    )(predicted_img, ksr, ksi, m2, fh, fwr, fwi)

    return out.reshape(B, 1, H, W)


def _reference(predicted_img, us_kspace, us_mask):
    p = predicted_img[:, 0, :, :]
    kp = jnp.fft.fft2(p, norm="ortho")
    ksc = us_kspace[..., 0] + 1j * us_kspace[..., 1]
    u = us_mask * ksc + (1.0 - us_mask) * kp
    return jnp.real(jnp.fft.ifft2(u, norm="ortho"))[:, None, :, :].astype(jnp.float32)


if __name__ == "__main__":
    B, C, H, W = 2, 2, 16, 16
    key = jax.random.PRNGKey(0)
    k1, k2, k3 = jax.random.split(key, 3)

    predicted_img = jax.random.normal(k1, (B, C, H, W), dtype=jnp.float32)
    us_kspace = jax.random.normal(k2, (B, H, W, 2), dtype=jnp.float32)
    us_mask = jax.random.bernoulli(k3, p=0.4, shape=(B, H, W)).astype(jnp.float32)

    out = jax.block_until_ready(data_consistency_layer(predicted_img, us_kspace, us_mask))
    ref = jax.block_until_ready(_reference(predicted_img, us_kspace, us_mask))

    assert out.shape == (B, 1, H, W) and out.dtype == jnp.float32
    np.testing.assert_allclose(np.asarray(out), np.asarray(ref), rtol=1e-4, atol=1e-4)
    print("KERNEL_OK")
</pallas_src>

<mosaic_0001>
module attributes {stable_mosaic.version = 11 : i64} {
  func.func @_dc_kernel(%arg0: i32, %arg1: memref<2x1x16x16xf32, #tpu.memory_space<vmem>>, %arg2: memref<32x16xf32, #tpu.memory_space<vmem>>, %arg3: memref<32x16xf32, #tpu.memory_space<vmem>>, %arg4: memref<32x16xf32, #tpu.memory_space<vmem>>, %arg5: memref<32x16xf32, #tpu.memory_space<vmem>>, %arg6: memref<16x16xf32, #tpu.memory_space<vmem>>, %arg7: memref<16x16xf32, #tpu.memory_space<vmem>>, %arg8: memref<32x16xf32, #tpu.memory_space<vmem>>) attributes {dimension_semantics = [#tpu.dimension_semantics<parallel>], iteration_bounds = array<i64: 1>, scalar_prefetch = 0 : i64, scratch_operands = 0 : i64, tpu.core_type = #tpu.core_type<tc>, window_params = [{transform_indices = @transform_0, window_bounds = array<i64: 2, 1, 16, 16>}, {transform_indices = @transform_1, window_bounds = array<i64: 32, 16>}, {transform_indices = @transform_2, window_bounds = array<i64: 32, 16>}, {transform_indices = @transform_3, window_bounds = array<i64: 32, 16>}, {pipeline_mode = #tpu.pipeline_mode<synchronous>, transform_indices = @transform_4, window_bounds = array<i64: 32, 16>}, {pipeline_mode = #tpu.pipeline_mode<synchronous>, transform_indices = @transform_5, window_bounds = array<i64: 16, 16>}, {pipeline_mode = #tpu.pipeline_mode<synchronous>, transform_indices = @transform_6, window_bounds = array<i64: 16, 16>}, {transform_indices = @transform_7, window_bounds = array<i64: 32, 16>}]} {
    %c0 = arith.constant 0 : index
    %c0_0 = arith.constant 0 : index
    %0 = vector.load %arg5[%c0, %c0_0] : memref<32x16xf32, #tpu.memory_space<vmem>>, vector<32x16xf32>
    %c0_1 = arith.constant 0 : index
    %c0_2 = arith.constant 0 : index
    %1 = vector.load %arg6[%c0_1, %c0_2] : memref<16x16xf32, #tpu.memory_space<vmem>>, vector<16x16xf32>
    %c0_3 = arith.constant 0 : index
    %c0_4 = arith.constant 0 : index
    %2 = vector.load %arg7[%c0_3, %c0_4] : memref<16x16xf32, #tpu.memory_space<vmem>>, vector<16x16xf32>
    %c0_5 = arith.constant 0 : index
    %c0_6 = arith.constant 0 : index
    %c0_7 = arith.constant 0 : index
    %c0_8 = arith.constant 0 : index
    %3 = vector.load %arg1[%c0_5, %c0_6, %c0_7, %c0_8] : memref<2x1x16x16xf32, #tpu.memory_space<vmem>>, vector<1x1x16x16xf32>
    %4 = vector.shape_cast %3 : vector<1x1x16x16xf32> to vector<16x16xf32>
    %c1 = arith.constant 1 : index
    %c0_9 = arith.constant 0 : index
    %c0_10 = arith.constant 0 : index
    %c0_11 = arith.constant 0 : index
    %5 = vector.load %arg1[%c1, %c0_9, %c0_10, %c0_11] : memref<2x1x16x16xf32, #tpu.memory_space<vmem>>, vector<1x1x16x16xf32>
    %6 = vector.shape_cast %5 : vector<1x1x16x16xf32> to vector<16x16xf32>
    %7 = tpu.concatenate %4, %6 in 0 : vector<16x16xf32>, vector<16x16xf32> -> vector<32x16xf32>
    %cst = arith.constant dense<0.000000e+00> : vector<32x16xf32>
    %8 = tpu.matmul %7, %1, %cst {dimension_numbers = #tpu.dot_dimension_numbers<[1], [0], [0], [1], [0, 0, 1, 1], [], []>} : vector<32x16xf32>, vector<16x16xf32>, vector<32x16xf32> -> vector<32x16xf32>
    %cst_12 = arith.constant dense<0.000000e+00> : vector<32x16xf32>
    %9 = tpu.matmul %7, %2, %cst_12 {dimension_numbers = #tpu.dot_dimension_numbers<[1], [0], [0], [1], [0, 0, 1, 1], [], []>} : vector<32x16xf32>, vector<16x16xf32>, vector<32x16xf32> -> vector<32x16xf32>
    %10 = vector.extract_strided_slice %8 {offsets = [0, 0], sizes = [16, 16], strides = [1, 1]} : vector<32x16xf32> to vector<16x16xf32>
    %11 = vector.extract_strided_slice %9 {offsets = [0, 0], sizes = [16, 16], strides = [1, 1]} : vector<32x16xf32> to vector<16x16xf32>
    %cst_13 = arith.constant dense<0.000000e+00> : vector<32x16xf32>
    %12 = tpu.matmul %0, %10, %cst_13 {dimension_numbers = #tpu.dot_dimension_numbers<[1], [0], [0], [1], [0, 0, 1, 1], [], []>} : vector<32x16xf32>, vector<16x16xf32>, vector<32x16xf32> -> vector<32x16xf32>
    %cst_14 = arith.constant dense<0.000000e+00> : vector<32x16xf32>
    %13 = tpu.matmul %0, %11, %cst_14 {dimension_numbers = #tpu.dot_dimension_numbers<[1], [0], [0], [1], [0, 0, 1, 1], [], []>} : vector<32x16xf32>, vector<16x16xf32>, vector<32x16xf32> -> vector<32x16xf32>
    %14 = vector.extract_strided_slice %12 {offsets = [0, 0], sizes = [16, 16], strides = [1, 1]} : vector<32x16xf32> to vector<16x16xf32>
    %15 = vector.extract_strided_slice %13 {offsets = [16, 0], sizes = [16, 16], strides = [1, 1]} : vector<32x16xf32> to vector<16x16xf32>
    %16 = arith.subf %14, %15 : vector<16x16xf32>
    %17 = vector.extract_strided_slice %13 {offsets = [0, 0], sizes = [16, 16], strides = [1, 1]} : vector<32x16xf32> to vector<16x16xf32>
    %18 = vector.extract_strided_slice %12 {offsets = [16, 0], sizes = [16, 16], strides = [1, 1]} : vector<32x16xf32> to vector<16x16xf32>
    %19 = arith.addf %17, %18 : vector<16x16xf32>
    %c0_15 = arith.constant 0 : index
    %c0_16 = arith.constant 0 : index
    %20 = vector.load %arg4[%c0_15, %c0_16] : memref<32x16xf32, #tpu.memory_space<vmem>>, vector<16x16xf32>
    %c0_17 = arith.constant 0 : index
    %c0_18 = arith.constant 0 : index
    %21 = vector.load %arg2[%c0_17, %c0_18] : memref<32x16xf32, #tpu.memory_space<vmem>>, vector<16x16xf32>
    %22 = arith.subf %21, %16 : vector<16x16xf32>
    %23 = arith.mulf %20, %22 : vector<16x16xf32>
    %24 = arith.addf %16, %23 : vector<16x16xf32>
    %c0_19 = arith.constant 0 : index
    %c0_20 = arith.constant 0 : index
    %25 = vector.load %arg3[%c0_19, %c0_20] : memref<32x16xf32, #tpu.memory_space<vmem>>, vector<16x16xf32>
    %26 = arith.subf %25, %19 : vector<16x16xf32>
    %27 = arith.mulf %20, %26 : vector<16x16xf32>
    %28 = arith.addf %19, %27 : vector<16x16xf32>
    %cst_21 = arith.constant dense<0.000000e+00> : vector<32x16xf32>
    %29 = tpu.matmul %0, %24, %cst_21 {dimension_numbers = #tpu.dot_dimension_numbers<[1], [0], [0], [1], [0, 0, 1, 1], [], []>} : vector<32x16xf32>, vector<16x16xf32>, vector<32x16xf32> -> vector<32x16xf32>
    %cst_22 = arith.constant dense<0.000000e+00> : vector<32x16xf32>
    %30 = tpu.matmul %0, %28, %cst_22 {dimension_numbers = #tpu.dot_dimension_numbers<[1], [0], [0], [1], [0, 0, 1, 1], [], []>} : vector<32x16xf32>, vector<16x16xf32>, vector<32x16xf32> -> vector<32x16xf32>
    %31 = vector.extract_strided_slice %29 {offsets = [0, 0], sizes = [16, 16], strides = [1, 1]} : vector<32x16xf32> to vector<16x16xf32>
    %32 = vector.extract_strided_slice %30 {offsets = [16, 0], sizes = [16, 16], strides = [1, 1]} : vector<32x16xf32> to vector<16x16xf32>
    %33 = arith.addf %31, %32 : vector<16x16xf32>
    %34 = vector.extract_strided_slice %30 {offsets = [0, 0], sizes = [16, 16], strides = [1, 1]} : vector<32x16xf32> to vector<16x16xf32>
    %35 = vector.extract_strided_slice %29 {offsets = [16, 0], sizes = [16, 16], strides = [1, 1]} : vector<32x16xf32> to vector<16x16xf32>
    %36 = arith.subf %34, %35 : vector<16x16xf32>
    %37 = vector.extract_strided_slice %8 {offsets = [16, 0], sizes = [16, 16], strides = [1, 1]} : vector<32x16xf32> to vector<16x16xf32>
    %38 = vector.extract_strided_slice %9 {offsets = [16, 0], sizes = [16, 16], strides = [1, 1]} : vector<32x16xf32> to vector<16x16xf32>
    %cst_23 = arith.constant dense<0.000000e+00> : vector<32x16xf32>
    %39 = tpu.matmul %0, %37, %cst_23 {dimension_numbers = #tpu.dot_dimension_numbers<[1], [0], [0], [1], [0, 0, 1, 1], [], []>} : vector<32x16xf32>, vector<16x16xf32>, vector<32x16xf32> -> vector<32x16xf32>
    %cst_24 = arith.constant dense<0.000000e+00> : vector<32x16xf32>
    %40 = tpu.matmul %0, %38, %cst_24 {dimension_numbers = #tpu.dot_dimension_numbers<[1], [0], [0], [1], [0, 0, 1, 1], [], []>} : vector<32x16xf32>, vector<16x16xf32>, vector<32x16xf32> -> vector<32x16xf32>
    %41 = vector.extract_strided_slice %39 {offsets = [0, 0], sizes = [16, 16], strides = [1, 1]} : vector<32x16xf32> to vector<16x16xf32>
    %42 = vector.extract_strided_slice %40 {offsets = [16, 0], sizes = [16, 16], strides = [1, 1]} : vector<32x16xf32> to vector<16x16xf32>
    %43 = arith.subf %41, %42 : vector<16x16xf32>
    %44 = vector.extract_strided_slice %40 {offsets = [0, 0], sizes = [16, 16], strides = [1, 1]} : vector<32x16xf32> to vector<16x16xf32>
    %45 = vector.extract_strided_slice %39 {offsets = [16, 0], sizes = [16, 16], strides = [1, 1]} : vector<32x16xf32> to vector<16x16xf32>
    %46 = arith.addf %44, %45 : vector<16x16xf32>
    %c16 = arith.constant 16 : index
    %c0_25 = arith.constant 0 : index
    %47 = vector.load %arg4[%c16, %c0_25] : memref<32x16xf32, #tpu.memory_space<vmem>>, vector<16x16xf32>
    %c16_26 = arith.constant 16 : index
    %c0_27 = arith.constant 0 : index
    %48 = vector.load %arg2[%c16_26, %c0_27] : memref<32x16xf32, #tpu.memory_space<vmem>>, vector<16x16xf32>
    %49 = arith.subf %48, %43 : vector<16x16xf32>
    %50 = arith.mulf %47, %49 : vector<16x16xf32>
    %51 = arith.addf %43, %50 : vector<16x16xf32>
    %c16_28 = arith.constant 16 : index
    %c0_29 = arith.constant 0 : index
    %52 = vector.load %arg3[%c16_28, %c0_29] : memref<32x16xf32, #tpu.memory_space<vmem>>, vector<16x16xf32>
    %53 = arith.subf %52, %46 : vector<16x16xf32>
    %54 = arith.mulf %47, %53 : vector<16x16xf32>
    %55 = arith.addf %46, %54 : vector<16x16xf32>
    %cst_30 = arith.constant dense<0.000000e+00> : vector<32x16xf32>
    %56 = tpu.matmul %0, %51, %cst_30 {dimension_numbers = #tpu.dot_dimension_numbers<[1], [0], [0], [1], [0, 0, 1, 1], [], []>} : vector<32x16xf32>, vector<16x16xf32>, vector<32x16xf32> -> vector<32x16xf32>
    %cst_31 = arith.constant dense<0.000000e+00> : vector<32x16xf32>
    %57 = tpu.matmul %0, %55, %cst_31 {dimension_numbers = #tpu.dot_dimension_numbers<[1], [0], [0], [1], [0, 0, 1, 1], [], []>} : vector<32x16xf32>, vector<16x16xf32>, vector<32x16xf32> -> vector<32x16xf32>
    %58 = vector.extract_strided_slice %56 {offsets = [0, 0], sizes = [16, 16], strides = [1, 1]} : vector<32x16xf32> to vector<16x16xf32>
    %59 = vector.extract_strided_slice %57 {offsets = [16, 0], sizes = [16, 16], strides = [1, 1]} : vector<32x16xf32> to vector<16x16xf32>
    %60 = arith.addf %58, %59 : vector<16x16xf32>
    %61 = vector.extract_strided_slice %57 {offsets = [0, 0], sizes = [16, 16], strides = [1, 1]} : vector<32x16xf32> to vector<16x16xf32>
    %62 = vector.extract_strided_slice %56 {offsets = [16, 0], sizes = [16, 16], strides = [1, 1]} : vector<32x16xf32> to vector<16x16xf32>
    %63 = arith.subf %61, %62 : vector<16x16xf32>
    %64 = tpu.concatenate %33, %60 in 0 : vector<16x16xf32>, vector<16x16xf32> -> vector<32x16xf32>
    %65 = tpu.concatenate %36, %63 in 0 : vector<16x16xf32>, vector<16x16xf32> -> vector<32x16xf32>
    %cst_32 = arith.constant dense<0.000000e+00> : vector<32x16xf32>
    %66 = tpu.matmul %64, %1, %cst_32 {dimension_numbers = #tpu.dot_dimension_numbers<[1], [0], [0], [1], [0, 0, 1, 1], [], []>} : vector<32x16xf32>, vector<16x16xf32>, vector<32x16xf32> -> vector<32x16xf32>
    %cst_33 = arith.constant dense<0.000000e+00> : vector<32x16xf32>
    %67 = tpu.matmul %65, %2, %cst_33 {dimension_numbers = #tpu.dot_dimension_numbers<[1], [0], [0], [1], [0, 0, 1, 1], [], []>} : vector<32x16xf32>, vector<16x16xf32>, vector<32x16xf32> -> vector<32x16xf32>
    %68 = arith.addf %66, %67 : vector<32x16xf32>
    %c0_34 = arith.constant 0 : index
    %c0_35 = arith.constant 0 : index
    %69 = vector.load %arg8[%c0_34, %c0_35] : memref<32x16xf32, #tpu.memory_space<vmem>>, vector<32x16xf32>
    tpu.vector_store %arg8[%c0_34, %c0_35], %68 {strides = array<i32>} : memref<32x16xf32, #tpu.memory_space<vmem>>, vector<32x16xf32>,
    return
  }
  func.func @transform_0(%arg0: i32) -> (i32, i32, i32, i32) {
    %c0_i32 = arith.constant 0 : i32
    %c0_i32_0 = arith.constant 0 : i32
    %c0_i32_1 = arith.constant 0 : i32
    %c0_i32_2 = arith.constant 0 : i32
    return %arg0, %c0_i32, %c0_i32_0, %c0_i32_1 : i32, i32, i32, i32
  }
  func.func @transform_1(%arg0: i32) -> (i32, i32) {
    %c0_i32 = arith.constant 0 : i32
    %c0_i32_0 = arith.constant 0 : i32
    return %arg0, %c0_i32 : i32, i32
  }
  func.func @transform_2(%arg0: i32) -> (i32, i32) {
    %c0_i32 = arith.constant 0 : i32
    %c0_i32_0 = arith.constant 0 : i32
    return %arg0, %c0_i32 : i32, i32
  }
  func.func @transform_3(%arg0: i32) -> (i32, i32) {
    %c0_i32 = arith.constant 0 : i32
    %c0_i32_0 = arith.constant 0 : i32
    return %arg0, %c0_i32 : i32, i32
  }
  func.func @transform_4(%arg0: i32) -> (i32, i32) {
    %c0_i32 = arith.constant 0 : i32
    %c0_i32_0 = arith.constant 0 : i32
    %c0_i32_1 = arith.constant 0 : i32
    return %c0_i32, %c0_i32_0 : i32, i32
  }
  func.func @transform_5(%arg0: i32) -> (i32, i32) {
    %c0_i32 = arith.constant 0 : i32
    %c0_i32_0 = arith.constant 0 : i32
    %c0_i32_1 = arith.constant 0 : i32
    return %c0_i32, %c0_i32_0 : i32, i32
  }
  func.func @transform_6(%arg0: i32) -> (i32, i32) {
    %c0_i32 = arith.constant 0 : i32
    %c0_i32_0 = arith.constant 0 : i32
    %c0_i32_1 = arith.constant 0 : i32
    return %c0_i32, %c0_i32_0 : i32, i32
  }
  func.func @transform_7(%arg0: i32) -> (i32, i32) {
    %c0_i32 = arith.constant 0 : i32
    %c0_i32_0 = arith.constant 0 : i32
    return %arg0, %c0_i32 : i32, i32
  }
}

</mosaic_0001>

<llo_original>
// kernel: tpu_custom_call.1
$region0: #{tpu_custom_call.1}
  #allocation0 [shape = 'u32[]', space=smem, size = 0x4, offset = 0x4, fixed_abs, tag = 'smem constant byte address 0x4 - core index']
  #allocation1 [shape = 'u32[144,128]{1,0:T(1,128)}', space=vmem, size = 0x12000, scoped, tag = 'internal scratch']
  %s0 = inlined_call_operand.vmem [shape: f32[2,2,16,16], index: 0, kind: input, shape index: {}]
  %s1 = inlined_call_operand.vmem [shape: f32[32,16], index: 1, kind: input, shape index: {}]
  %s2 = inlined_call_operand.vmem [shape: f32[32,16], index: 2, kind: input, shape index: {}]
  %s3 = inlined_call_operand.vmem [shape: f32[32,16], index: 3, kind: input, shape index: {}]
  %s4 = inlined_call_operand.vmem [shape: f32[32,16], index: 4, kind: input, shape index: {}]
  %s5 = inlined_call_operand.vmem [shape: f32[16,16], index: 5, kind: input, shape index: {}]
  %s6 = inlined_call_operand.vmem [shape: f32[16,16], index: 6, kind: input, shape index: {}]
  %s7 = inlined_call_operand.vmem [shape: f32[32,16], index: 7, kind: output, shape index: {}]
  %s8 = sld [smem:[#allocation0]]
  $region76: #{tpu_custom_call.1} parent=0
    _
  %s10 = ssub.s32 1, %s8
  %s11 = scalar_select 0, %s10, %s8
  $region1: #{tpu_custom_call.1} parent=0
    #allocation2 [shape = 'u8[16384]{0}', space=vmem, size = 0x4000, scoped, tag = 'input window, operand 0, single buffered']
    // Predicated region
    $region2: #{tpu_custom_call.1} parent=1 // pred_check
      _
    $region3: #{tpu_custom_call.1} parent=1 // pred_check_branch
      %13 = sbr.rel (0) target = $region5
    $region4: #{tpu_custom_call.1} parent=1 // pred_region
      // Predicated region
      $region6: #{tpu_custom_call.1} parent=4 // pred_check
        _
      $region7: #{tpu_custom_call.1} parent=4 // pred_check_branch
        %15 = sbr.rel (0) target = $region9
      $region8: #{tpu_custom_call.1} parent=4 // pred_region
        // Predicated region
        $region10: #{tpu_custom_call.1} parent=8 // pred_check
          _
        $region11: #{tpu_custom_call.1} parent=8 // pred_check_branch
          %17 = sbr.rel (0) target = $region13
        $region12: #{tpu_custom_call.1} parent=8 // pred_region
          // Predicated region
          $region25: #{tpu_custom_call.1} parent=12 // pred_check
            _
          $region26: #{tpu_custom_call.1} parent=12 // pred_check_branch
            %38 = sbr.rel (0) target = $region28
          $region27: #{tpu_custom_call.1} parent=12 // pred_region
            loop: start=0, step=1, limit=1
            $region29: #{tpu_custom_call.1} parent=27 // loop_pre_header
              _
            $region30: #{tpu_custom_call.1} parent=27 // loop_header
              %s40 = sphi 0, %s44
              %p41 = scmp.ge.s32.totalorder %s40, 1
              %s45 = sphi %s0, %s0
              %s46 = sphi [#allocation2], [#allocation2]
            $region31: #{tpu_custom_call.1} parent=27 // loop_header_branch
              %43 = sbr.rel (%p41) target = $region35
            $region32: #{tpu_custom_call.1} parent=27 // loop_body
              %v47 = vld [vmem:[%s45] sm:$0xff]
              %48 = vst [vmem:[%s46] sm:$0xff] %v47
              %v49 = vld [vmem:[%s45 + $0x8] sm:$0xff]
              %50 = vst [vmem:[%s46 + $0x8] sm:$0xff] %v49
              %v51 = vld [vmem:[%s45 + $0x20] sm:$0xff]
              %52 = vst [vmem:[%s46 + $0x10] sm:$0xff] %v51
              %v53 = vld [vmem:[%s45 + $0x28] sm:$0xff]
              %54 = vst [vmem:[%s46 + $0x18] sm:$0xff] %v53
            $region33: #{tpu_custom_call.1} parent=27 // loop_footer
              %s44 = sadd.s32 1, %s40
            $region34: #{tpu_custom_call.1} parent=27 // loop_footer_branch
              %39 = sbr.rel target = $region30
            $region35: #{tpu_custom_call.1} parent=27 // loop_exit
              _
          $region28: #{tpu_custom_call.1} parent=12 // pred_fallthru
            _
          // Predicated region
          $region36: #{tpu_custom_call.1} parent=12 // pred_check
            _
          $region37: #{tpu_custom_call.1} parent=12 // pred_check_branch
            %56 = sbr.rel target = $region39
          $region38: #{tpu_custom_call.1} parent=12 // pred_region
            _
          $region39: #{tpu_custom_call.1} parent=12 // pred_fallthru
            _
        $region13: #{tpu_custom_call.1} parent=8 // pred_fallthru
          _
        // Predicated region
        $region14: #{tpu_custom_call.1} parent=8 // pred_check
          _
        $region15: #{tpu_custom_call.1} parent=8 // pred_check_branch
          %19 = sbr.rel target = $region17
        $region16: #{tpu_custom_call.1} parent=8 // pred_region
          loop: start=0, step=1, limit=1
          $region18: #{tpu_custom_call.1} parent=16 // loop_pre_header
            _
          $region19: #{tpu_custom_call.1} parent=16 // loop_header
            %s22 = sphi 0, %s26
            %p23 = scmp.ge.s32.totalorder %s22, 1
            %s27 = sphi %s0, %s0
            %s28 = sphi [#allocation2], [#allocation2]
          $region20: #{tpu_custom_call.1} parent=16 // loop_header_branch
            %25 = sbr.rel (%p23) target = $region24
          $region21: #{tpu_custom_call.1} parent=16 // loop_body
            %v29 = vld [vmem:[%s27] sm:$0xff]
            %30 = vst [vmem:[%s28] sm:$0xff] %v29
            %v31 = vld [vmem:[%s27 + $0x8] sm:$0xff]
            %32 = vst [vmem:[%s28 + $0x8] sm:$0xff] %v31
            %v33 = vld [vmem:[%s27 + $0x20] sm:$0xff]
            %34 = vst [vmem:[%s28 + $0x10] sm:$0xff] %v33
            %v35 = vld [vmem:[%s27 + $0x28] sm:$0xff]
            %36 = vst [vmem:[%s28 + $0x18] sm:$0xff] %v35
          $region22: #{tpu_custom_call.1} parent=16 // loop_footer
            %s26 = sadd.s32 1, %s22
          $region23: #{tpu_custom_call.1} parent=16 // loop_footer_branch
            %21 = sbr.rel target = $region19
          $region24: #{tpu_custom_call.1} parent=16 // loop_exit
            _
        $region17: #{tpu_custom_call.1} parent=8 // pred_fallthru
          _
      $region9: #{tpu_custom_call.1} parent=4 // pred_fallthru
        _
      %57 = vnop
    $region5: #{tpu_custom_call.1} parent=1 // pred_fallthru
      _
    // Predicated region
    $region40: #{tpu_custom_call.1} parent=1 // pred_check
      _
    $region41: #{tpu_custom_call.1} parent=1 // pred_check_branch
      %59 = sbr.rel (0) target = $region43
    $region42: #{tpu_custom_call.1} parent=1 // pred_region
      _
    $region43: #{tpu_custom_call.1} parent=1 // pred_fallthru
      _
    // Predicated region
    $region44: #{tpu_custom_call.1} parent=1 // pred_check
      _
    $region45: #{tpu_custom_call.1} parent=1 // pred_check_branch
      %61 = sbr.rel (0) target = $region47
    $region46: #{tpu_custom_call.1} parent=1 // pred_region
      _
    $region47: #{tpu_custom_call.1} parent=1 // pred_fallthru
      _
    // Predicated region
    $region48: #{tpu_custom_call.1} parent=1 // pred_check
      _
    $region49: #{tpu_custom_call.1} parent=1 // pred_check_branch
      %63 = sbr.rel (0) target = $region51
    $region50: #{tpu_custom_call.1} parent=1 // pred_region
      _
    $region51: #{tpu_custom_call.1} parent=1 // pred_fallthru
      _
    // Predicated region
    $region52: #{tpu_custom_call.1} parent=1 // pred_check
      _
    $region53: #{tpu_custom_call.1} parent=1 // pred_check_branch
      %65 = sbr.rel (0) target = $region55
    $region54: #{tpu_custom_call.1} parent=1 // pred_region
      _
    $region55: #{tpu_custom_call.1} parent=1 // pred_fallthru
      _
    // Predicated region
    $region56: #{tpu_custom_call.1} parent=1 // pred_check
      _
    $region57: #{tpu_custom_call.1} parent=1 // pred_check_branch
      %67 = sbr.rel (0) target = $region59
    $region58: #{tpu_custom_call.1} parent=1 // pred_region
      _
    $region59: #{tpu_custom_call.1} parent=1 // pred_fallthru
      _
    // Predicated region
    $region60: #{tpu_custom_call.1} parent=1 // pred_check
      _
    $region61: #{tpu_custom_call.1} parent=1 // pred_check_branch
      %69 = sbr.rel (0) target = $region63
    $region62: #{tpu_custom_call.1} parent=1 // pred_region
      _
    $region63: #{tpu_custom_call.1} parent=1 // pred_fallthru
      _
    // Predicated region
    $region64: #{tpu_custom_call.1} parent=1 // pred_check
      _
    $region65: #{tpu_custom_call.1} parent=1 // pred_check_branch
      %71 = sbr.rel (0) target = $region67
    $region66: #{tpu_custom_call.1} parent=1 // pred_region
      _
    $region67: #{tpu_custom_call.1} parent=1 // pred_fallthru
      _
    %v72 = vld [vmem:[%s4] sm:$0xff]
    %v73 = vld [vmem:[%s4 + $0x8] sm:$0xff]
    %v74 = vld [vmem:[%s4 + $0x10] sm:$0xff]
    %v75 = vld [vmem:[%s4 + $0x18] sm:$0xff]
    %v76 = vld [vmem:[%s5] sm:$0xff]
    %v77 = vld [vmem:[%s5 + $0x8] sm:$0xff]
    %v78 = vld [vmem:[%s6] sm:$0xff]
    %v79 = vld [vmem:[%s6 + $0x8] sm:$0xff]
    %v80 = vld [vmem:[#allocation2] sm:$0xff]
    %v81 = vld [vmem:[#allocation2 + $0x8] sm:$0xff]
    %s82 = scalar_lea.vmem [#allocation2], 16
    %v83 = vld [vmem:[%s82] sm:$0xff]
    %v84 = vld [vmem:[%s82 + $0x8] sm:$0xff]
    %vm85 = vcmask 130048
    %v87 = vsel %vm85, %v80, 0
    %v90 = vsel %vm85, %v81, 0
    %v93 = vsel %vm85, %v83, 0
    %v96 = vsel %vm85, %v84, 0
    %98 = vmatprep.subr.mxu0 0.0
    %99 = vmatpush1.msra.mxu0 %v76
    %100 = vmatprep.subr.mxu0 0.0
    %101 = vmatpush1.msra.mxu0 %v77
    %102 = vmatprep.subr.mxu0 0.0
    %103 = vmatpush1.msra.mxu0 0.0
    %104 = vmatprep.subr.mxu0 0.0
    %105 = vmatpush1.msra.mxu0 0.0
    %106 = vmatprep.subr.mxu0 0.0
    %107 = vmatpush1.msra.mxu0 0.0
    %108 = vmatprep.subr.mxu0 0.0
    %109 = vmatpush1.msra.mxu0 0.0
    %110 = vmatprep.subr.mxu0 0.0
    %111 = vmatpush1.msra.mxu0 0.0
    %112 = vmatprep.subr.mxu0 0.0
    %113 = vmatpush1.msra.mxu0 0.0
    %114 = vmatprep.subr.mxu0 0.0
    %115 = vmatpush1.msra.mxu0 0.0
    %116 = vmatprep.subr.mxu0 0.0
    %117 = vmatpush1.msra.mxu0 0.0
    %118 = vmatprep.subr.mxu0 0.0
    %119 = vmatpush1.msra.mxu0 0.0
    %120 = vmatprep.subr.mxu0 0.0
    %121 = vmatpush1.msra.mxu0 0.0
    %122 = vmatprep.subr.mxu0 0.0
    %123 = vmatpush1.msra.mxu0 0.0
    %124 = vmatprep.subr.mxu0 0.0
    %125 = vmatpush1.msra.mxu0 0.0
    %126 = vmatprep.subr.mxu0 0.0
    %127 = vmatpush1.msra.mxu0 0.0
    %128 = vmatprep.subr.mxu0 0.0
    %129 = vmatpush1.msra.mxu0 0.0
    %130 = vmatprep.subr.mxu0 0.0
    %131 = vmatpush1.msra.mxu0 0.0
    %132 = vmatprep.subr.mxu0 0.0
    %133 = vmatpush1.msra.mxu0 0.0
    %134 = vmatprep.subr.mxu0 0.0
    %135 = vmatpush1.msra.mxu0 0.0
    %136 = vmatprep.subr.mxu0 0.0
    %137 = vmatpush1.msra.mxu0 0.0
    %138 = vmatprep.subr.mxu0 0.0
    %139 = vmatpush1.msra.mxu0 0.0
    %140 = vmatprep.subr.mxu0 0.0
    %141 = vmatpush1.msra.mxu0 0.0
    %142 = vmatprep.subr.mxu0 0.0
    %143 = vmatpush1.msra.mxu0 0.0
    %144 = vmatprep.subr.mxu0 0.0
    %145 = vmatpush1.msra.mxu0 0.0
    %146 = vmatprep.subr.mxu0 0.0
    %147 = vmatpush1.msra.mxu0 0.0
    %148 = vmatprep.subr.mxu0 0.0
    %149 = vmatpush1.msra.mxu0 0.0
    %150 = vmatprep.subr.mxu0 0.0
    %151 = vmatpush1.msra.mxu0 0.0
    %152 = vmatprep.subr.mxu0 0.0
    %153 = vmatpush1.msra.mxu0 0.0
    %154 = vmatprep.subr.mxu0 0.0
    %155 = vmatpush1.msra.mxu0 0.0
    %156 = vmatprep.subr.mxu0 0.0
    %157 = vmatpush1.msra.mxu0 0.0
    %158 = vmatprep.subr.mxu0 0.0
    %159 = vmatpush1.msra.mxu0 0.0
    %160 = vmatprep.subr.mxu0 0.0
    %161 = vmatpush1.msra.mxu0 0.0
    %162 = vmatprep.mubr.f32.mxu0 0.0
    %163 = vmatmul.mubr.f32.gmra.mrb[0].mxu0 %v87
    %v164 = vpop.f32.mrb[0].mxu0
    %v165 = vadd.f32 0.0, %v164
    %v166 = vpop.f32.mrb[0].mxu0
    %167 = vmatprep.mubr.f32.mxu0 0.0
    %168 = vmatmul.mubr.f32.gmra.mrb[0].mxu0 %v90
    %v169 = vpop.f32.mrb[0].mxu0
    %v170 = vadd.f32 0.0, %v169
    %v171 = vpop.f32.mrb[0].mxu0
    %172 = vmatprep.mubr.f32.mxu0 0.0
    %173 = vmatmul.mubr.f32.gmra.mrb[0].mxu0 %v93
    %v174 = vpop.f32.mrb[0].mxu0
    %v175 = vadd.f32 0.0, %v174
    %v176 = vpop.f32.mrb[0].mxu0
    %177 = vmatprep.mubr.f32.mxu0 0.0
    %178 = vmatmul.mubr.f32.gmra.mrb[0].mxu0 %v96
    %v179 = vpop.f32.mrb[0].mxu0
    %v180 = vadd.f32 0.0, %v179
    %v181 = vpop.f32.mrb[0].mxu0
    %182 = vdwg.mxu0
    %183 = vmatprep.subr.mxu0 0.0
    %184 = vmatpush1.msra.mxu0 %v78
    %185 = vmatprep.subr.mxu0 0.0
    %186 = vmatpush1.msra.mxu0 %v79
    %187 = vmatprep.subr.mxu0 0.0
    %188 = vmatpush1.msra.mxu0 0.0
    %189 = vmatprep.subr.mxu0 0.0
    %190 = vmatpush1.msra.mxu0 0.0
    %191 = vmatprep.subr.mxu0 0.0
    %192 = vmatpush1.msra.mxu0 0.0
    %193 = vmatprep.subr.mxu0 0.0
    %194 = vmatpush1.msra.mxu0 0.0
    %195 = vmatprep.subr.mxu0 0.0
    %196 = vmatpush1.msra.mxu0 0.0
    %197 = vmatprep.subr.mxu0 0.0
    %198 = vmatpush1.msra.mxu0 0.0
    %199 = vmatprep.subr.mxu0 0.0
    %200 = vmatpush1.msra.mxu0 0.0
    %201 = vmatprep.subr.mxu0 0.0
    %202 = vmatpush1.msra.mxu0 0.0
    %203 = vmatprep.subr.mxu0 0.0
    %204 = vmatpush1.msra.mxu0 0.0
    %205 = vmatprep.subr.mxu0 0.0
    %206 = vmatpush1.msra.mxu0 0.0
    %207 = vmatprep.subr.mxu0 0.0
    %208 = vmatpush1.msra.mxu0 0.0
    %209 = vmatprep.subr.mxu0 0.0
    %210 = vmatpush1.msra.mxu0 0.0
    %211 = vmatprep.subr.mxu0 0.0
    %212 = vmatpush1.msra.mxu0 0.0
    %213 = vmatprep.subr.mxu0 0.0
    %214 = vmatpush1.msra.mxu0 0.0
    %215 = vmatprep.subr.mxu0 0.0
    %216 = vmatpush1.msra.mxu0 0.0
    %217 = vmatprep.subr.mxu0 0.0
    %218 = vmatpush1.msra.mxu0 0.0
    %219 = vmatprep.subr.mxu0 0.0
    %220 = vmatpush1.msra.mxu0 0.0
    %221 = vmatprep.subr.mxu0 0.0
    %222 = vmatpush1.msra.mxu0 0.0
    %223 = vmatprep.subr.mxu0 0.0
    %224 = vmatpush1.msra.mxu0 0.0
    %225 = vmatprep.subr.mxu0 0.0
    %226 = vmatpush1.msra.mxu0 0.0
    %227 = vmatprep.subr.mxu0 0.0
    %228 = vmatpush1.msra.mxu0 0.0
    %229 = vmatprep.subr.mxu0 0.0
    %230 = vmatpush1.msra.mxu0 0.0
    %231 = vmatprep.subr.mxu0 0.0
    %232 = vmatpush1.msra.mxu0 0.0
    %233 = vmatprep.subr.mxu0 0.0
    %234 = vmatpush1.msra.mxu0 0.0
    %235 = vmatprep.subr.mxu0 0.0
    %236 = vmatpush1.msra.mxu0 0.0
    %237 = vmatprep.subr.mxu0 0.0
    %238 = vmatpush1.msra.mxu0 0.0
    %239 = vmatprep.subr.mxu0 0.0
    %240 = vmatpush1.msra.mxu0 0.0
    %241 = vmatprep.subr.mxu0 0.0
    %242 = vmatpush1.msra.mxu0 0.0
    %243 = vmatprep.subr.mxu0 0.0
    %244 = vmatpush1.msra.mxu0 0.0
    %245 = vmatprep.subr.mxu0 0.0
    %246 = vmatpush1.msra.mxu0 0.0
    %247 = vmatprep.mubr.f32.mxu0 0.0
    %248 = vmatmul.mubr.f32.gmra.mrb[0].mxu0 %v87
    %v249 = vpop.f32.mrb[0].mxu0
    %v250 = vadd.f32 0.0, %v249
    %v251 = vpop.f32.mrb[0].mxu0
    %252 = vmatprep.mubr.f32.mxu0 0.0
    %253 = vmatmul.mubr.f32.gmra.mrb[0].mxu0 %v90
    %v254 = vpop.f32.mrb[0].mxu0
    %v255 = vadd.f32 0.0, %v254
    %v256 = vpop.f32.mrb[0].mxu0
    %257 = vmatprep.mubr.f32.mxu0 0.0
    %258 = vmatmul.mubr.f32.gmra.mrb[0].mxu0 %v93
    %v259 = vpop.f32.mrb[0].mxu0
    %v260 = vadd.f32 0.0, %v259
    %v261 = vpop.f32.mrb[0].mxu0
    %262 = vmatprep.mubr.f32.mxu0 0.0
    %263 = vmatmul.mubr.f32.gmra.mrb[0].mxu0 %v96
    %v264 = vpop.f32.mrb[0].mxu0
    %v265 = vadd.f32 0.0, %v264
    %v266 = vpop.f32.mrb[0].mxu0
    %267 = vdwg.mxu0
    %v269 = vsel %vm85, %v72, 0
    %v272 = vsel %vm85, %v73, 0
    %v275 = vsel %vm85, %v74, 0
    %v278 = vsel %vm85, %v75, 0
    %280 = vmatprep.subr.mxu0 0.0
    %281 = vmatpush1.msra.mxu0 %v165
    %282 = vmatprep.subr.mxu0 0.0
    %283 = vmatpush1.msra.mxu0 %v170
    %284 = vmatprep.subr.mxu0 0.0
    %285 = vmatpush1.msra.mxu0 0.0
    %286 = vmatprep.subr.mxu0 0.0
    %287 = vmatpush1.msra.mxu0 0.0
    %288 = vmatprep.subr.mxu0 0.0
    %289 = vmatpush1.msra.mxu0 0.0
    %290 = vmatprep.subr.mxu0 0.0
    %291 = vmatpush1.msra.mxu0 0.0
    %292 = vmatprep.subr.mxu0 0.0
    %293 = vmatpush1.msra.mxu0 0.0
    %294 = vmatprep.subr.mxu0 0.0
    %295 = vmatpush1.msra.mxu0 0.0
    %296 = vmatprep.subr.mxu0 0.0
    %297 = vmatpush1.msra.mxu0 0.0
    %298 = vmatprep.subr.mxu0 0.0
    %299 = vmatpush1.msra.mxu0 0.0
    %300 = vmatprep.subr.mxu0 0.0
    %301 = vmatpush1.msra.mxu0 0.0
    %302 = vmatprep.subr.mxu0 0.0
    %303 = vmatpush1.msra.mxu0 0.0
    %304 = vmatprep.subr.mxu0 0.0
    %305 = vmatpush1.msra.mxu0 0.0
    %306 = vmatprep.subr.mxu0 0.0
    %307 = vmatpush1.msra.mxu0 0.0
    %308 = vmatprep.subr.mxu0 0.0
    %309 = vmatpush1.msra.mxu0 0.0
    %310 = vmatprep.subr.mxu0 0.0
    %311 = vmatpush1.msra.mxu0 0.0
    %312 = vmatprep.subr.mxu0 0.0
    %313 = vmatpush1.msra.mxu0 0.0
    %314 = vmatprep.subr.mxu0 0.0
    %315 = vmatpush1.msra.mxu0 0.0
    %316 = vmatprep.subr.mxu0 0.0
    %317 = vmatpush1.msra.mxu0 0.0
    %318 = vmatprep.subr.mxu0 0.0
    %319 = vmatpush1.msra.mxu0 0.0
    %320 = vmatprep.subr.mxu0 0.0
    %321 = vmatpush1.msra.mxu0 0.0
    %322 = vmatprep.subr.mxu0 0.0
    %323 = vmatpush1.msra.mxu0 0.0
    %324 = vmatprep.subr.mxu0 0.0
    %325 = vmatpush1.msra.mxu0 0.0
    %326 = vmatprep.subr.mxu0 0.0
    %327 = vmatpush1.msra.mxu0 0.0
    %328 = vmatprep.subr.mxu0 0.0
    %329 = vmatpush1.msra.mxu0 0.0
    %330 = vmatprep.subr.mxu0 0.0
    %331 = vmatpush1.msra.mxu0 0.0
    %332 = vmatprep.subr.mxu0 0.0
    %333 = vmatpush1.msra.mxu0 0.0
    %334 = vmatprep.subr.mxu0 0.0
    %335 = vmatpush1.msra.mxu0 0.0
    %336 = vmatprep.subr.mxu0 0.0
    %337 = vmatpush1.msra.mxu0 0.0
    %338 = vmatprep.subr.mxu0 0.0
    %339 = vmatpush1.msra.mxu0 0.0
    %340 = vmatprep.subr.mxu0 0.0
    %341 = vmatpush1.msra.mxu0 0.0
    %342 = vmatprep.subr.mxu0 0.0
    %343 = vmatpush1.msra.mxu0 0.0
    %344 = vmatprep.mubr.f32.mxu0 0.0
    %345 = vmatmul.mubr.f32.gmra.mrb[0].mxu0 %v269
    %v346 = vpop.f32.mrb[0].mxu0
    %v347 = vadd.f32 0.0, %v346
    %v348 = vpop.f32.mrb[0].mxu0
    %349 = vmatprep.mubr.f32.mxu0 0.0
    %350 = vmatmul.mubr.f32.gmra.mrb[0].mxu0 %v272
    %v351 = vpop.f32.mrb[0].mxu0
    %v352 = vadd.f32 0.0, %v351
    %v353 = vpop.f32.mrb[0].mxu0
    %354 = vmatprep.mubr.f32.mxu0 0.0
    %355 = vmatmul.mubr.f32.gmra.mrb[0].mxu0 %v275
    %v356 = vpop.f32.mrb[0].mxu0
    %v357 = vadd.f32 0.0, %v356
    %v358 = vpop.f32.mrb[0].mxu0
    %359 = vmatprep.mubr.f32.mxu0 0.0
    %360 = vmatmul.mubr.f32.gmra.mrb[0].mxu0 %v278
    %v361 = vpop.f32.mrb[0].mxu0
    %v362 = vadd.f32 0.0, %v361
    %v363 = vpop.f32.mrb[0].mxu0
    %364 = vdwg.mxu0
    %365 = vmatprep.subr.mxu0 0.0
    %366 = vmatpush1.msra.mxu0 %v250
    %367 = vmatprep.subr.mxu0 0.0
    %368 = vmatpush1.msra.mxu0 %v255
    %369 = vmatprep.subr.mxu0 0.0
    %370 = vmatpush1.msra.mxu0 0.0
    %371 = vmatprep.subr.mxu0 0.0
    %372 = vmatpush1.msra.mxu0 0.0
    %373 = vmatprep.subr.mxu0 0.0
    %374 = vmatpush1.msra.mxu0 0.0
    %375 = vmatprep.subr.mxu0 0.0
    %376 = vmatpush1.msra.mxu0 0.0
    %377 = vmatprep.subr.mxu0 0.0
    %378 = vmatpush1.msra.mxu0 0.0
    %379 = vmatprep.subr.mxu0 0.0
    %380 = vmatpush1.msra.mxu0 0.0
    %381 = vmatprep.subr.mxu0 0.0
    %382 = vmatpush1.msra.mxu0 0.0
    %383 = vmatprep.subr.mxu0 0.0
    %384 = vmatpush1.msra.mxu0 0.0
    %385 = vmatprep.subr.mxu0 0.0
    %386 = vmatpush1.msra.mxu0 0.0
    %387 = vmatprep.subr.mxu0 0.0
    %388 = vmatpush1.msra.mxu0 0.0
    %389 = vmatprep.subr.mxu0 0.0
    %390 = vmatpush1.msra.mxu0 0.0
    %391 = vmatprep.subr.mxu0 0.0
    %392 = vmatpush1.msra.mxu0 0.0
    %393 = vmatprep.subr.mxu0 0.0
    %394 = vmatpush1.msra.mxu0 0.0
    %395 = vmatprep.subr.mxu0 0.0
    %396 = vmatpush1.msra.mxu0 0.0
    %397 = vmatprep.subr.mxu0 0.0
    %398 = vmatpush1.msra.mxu0 0.0
    %399 = vmatprep.subr.mxu0 0.0
    %400 = vmatpush1.msra.mxu0 0.0
    %401 = vmatprep.subr.mxu0 0.0
    %402 = vmatpush1.msra.mxu0 0.0
    %403 = vmatprep.subr.mxu0 0.0
    %404 = vmatpush1.msra.mxu0 0.0
    %405 = vmatprep.subr.mxu0 0.0
    %406 = vmatpush1.msra.mxu0 0.0
    %407 = vmatprep.subr.mxu0 0.0
    %408 = vmatpush1.msra.mxu0 0.0
    %409 = vmatprep.subr.mxu0 0.0
    %410 = vmatpush1.msra.mxu0 0.0
    %411 = vmatprep.subr.mxu0 0.0
    %412 = vmatpush1.msra.mxu0 0.0
    %413 = vmatprep.subr.mxu0 0.0
    %414 = vmatpush1.msra.mxu0 0.0
    %415 = vmatprep.subr.mxu0 0.0
    %416 = vmatpush1.msra.mxu0 0.0
    %417 = vmatprep.subr.mxu0 0.0
    %418 = vmatpush1.msra.mxu0 0.0
    %419 = vmatprep.subr.mxu0 0.0
    %420 = vmatpush1.msra.mxu0 0.0
    %421 = vmatprep.subr.mxu0 0.0
    %422 = vmatpush1.msra.mxu0 0.0
    %423 = vmatprep.subr.mxu0 0.0
    %424 = vmatpush1.msra.mxu0 0.0
    %425 = vmatprep.subr.mxu0 0.0
    %426 = vmatpush1.msra.mxu0 0.0
    %427 = vmatprep.subr.mxu0 0.0
    %428 = vmatpush1.msra.mxu0 0.0
    %429 = vmatprep.mubr.f32.mxu0 0.0
    %430 = vmatmul.mubr.f32.gmra.mrb[0].mxu0 %v269
    %v431 = vpop.f32.mrb[0].mxu0
    %v432 = vadd.f32 0.0, %v431
    %v433 = vpop.f32.mrb[0].mxu0
    %434 = vmatprep.mubr.f32.mxu0 0.0
    %435 = vmatmul.mubr.f32.gmra.mrb[0].mxu0 %v272
    %v436 = vpop.f32.mrb[0].mxu0
    %v437 = vadd.f32 0.0, %v436
    %v438 = vpop.f32.mrb[0].mxu0
    %439 = vmatprep.mubr.f32.mxu0 0.0
    %440 = vmatmul.mubr.f32.gmra.mrb[0].mxu0 %v275
    %v441 = vpop.f32.mrb[0].mxu0
    %v442 = vadd.f32 0.0, %v441
    %v443 = vpop.f32.mrb[0].mxu0
    %444 = vmatprep.mubr.f32.mxu0 0.0
    %445 = vmatmul.mubr.f32.gmra.mrb[0].mxu0 %v278
    %v446 = vpop.f32.mrb[0].mxu0
    %v447 = vadd.f32 0.0, %v446
    %v448 = vpop.f32.mrb[0].mxu0
    %449 = vdwg.mxu0
    %v450 = vsub.f32 %v347, %v442
    %v451 = vsub.f32 %v352, %v447
    %v452 = vadd.f32 %v432, %v357
    %v453 = vadd.f32 %v437, %v362
    %v454 = vld [vmem:[%s3] sm:$0xff]
    %v455 = vld [vmem:[%s3 + $0x8] sm:$0xff]
    %v456 = vld [vmem:[%s1] sm:$0xff]
    %v457 = vld [vmem:[%s1 + $0x8] sm:$0xff]
    %v458 = vsub.f32 %v456, %v450
    %v459 = vsub.f32 %v457, %v451
    %v460 = vmul.f32 %v454, %v458
    %v461 = vmul.f32 %v455, %v459
    %v462 = vadd.f32 %v450, %v460
    %v463 = vadd.f32 %v451, %v461
    %v464 = vld [vmem:[%s2] sm:$0xff]
    %v465 = vld [vmem:[%s2 + $0x8] sm:$0xff]
    %v466 = vsub.f32 %v464, %v452
    %v467 = vsub.f32 %v465, %v453
    %v468 = vmul.f32 %v454, %v466
    %v469 = vmul.f32 %v455, %v467
    %v470 = vadd.f32 %v452, %v468
    %v471 = vadd.f32 %v453, %v469
    %472 = vmatprep.subr.mxu0 0.0
    %473 = vmatpush1.msra.mxu0 %v462
    %474 = vmatprep.subr.mxu0 0.0
    %475 = vmatpush1.msra.mxu0 %v463
    %476 = vmatprep.subr.mxu0 0.0
    %477 = vmatpush1.msra.mxu0 0.0
    %478 = vmatprep.subr.mxu0 0.0
    %479 = vmatpush1.msra.mxu0 0.0
    %480 = vmatprep.subr.mxu0 0.0
    %481 = vmatpush1.msra.mxu0 0.0
    %482 = vmatprep.subr.mxu0 0.0
    %483 = vmatpush1.msra.mxu0 0.0
    %484 = vmatprep.subr.mxu0 0.0
    %485 = vmatpush1.msra.mxu0 0.0
    %486 = vmatprep.subr.mxu0 0.0
    %487 = vmatpush1.msra.mxu0 0.0
    %488 = vmatprep.subr.mxu0 0.0
    %489 = vmatpush1.msra.mxu0 0.0
    %490 = vmatprep.subr.mxu0 0.0
    %491 = vmatpush1.msra.mxu0 0.0
    %492 = vmatprep.subr.mxu0 0.0
    %493 = vmatpush1.msra.mxu0 0.0
    %494 = vmatprep.subr.mxu0 0.0
    %495 = vmatpush1.msra.mxu0 0.0
    %496 = vmatprep.subr.mxu0 0.0
    %497 = vmatpush1.msra.mxu0 0.0
    %498 = vmatprep.subr.mxu0 0.0
    %499 = vmatpush1.msra.mxu0 0.0
    %500 = vmatprep.subr.mxu0 0.0
    %501 = vmatpush1.msra.mxu0 0.0
    %502 = vmatprep.subr.mxu0 0.0
    %503 = vmatpush1.msra.mxu0 0.0
    %504 = vmatprep.subr.mxu0 0.0
    %505 = vmatpush1.msra.mxu0 0.0
    %506 = vmatprep.subr.mxu0 0.0
    %507 = vmatpush1.msra.mxu0 0.0
    %508 = vmatprep.subr.mxu0 0.0
    %509 = vmatpush1.msra.mxu0 0.0
    %510 = vmatprep.subr.mxu0 0.0
    %511 = vmatpush1.msra.mxu0 0.0
    %512 = vmatprep.subr.mxu0 0.0
    %513 = vmatpush1.msra.mxu0 0.0
    %514 = vmatprep.subr.mxu0 0.0
    %515 = vmatpush1.msra.mxu0 0.0
    %516 = vmatprep.subr.mxu0 0.0
    %517 = vmatpush1.msra.mxu0 0.0
    %518 = vmatprep.subr.mxu0 0.0
    %519 = vmatpush1.msra.mxu0 0.0
    %520 = vmatprep.subr.mxu0 0.0
    %521 = vmatpush1.msra.mxu0 0.0
    %522 = vmatprep.subr.mxu0 0.0
    %523 = vmatpush1.msra.mxu0 0.0
    %524 = vmatprep.subr.mxu0 0.0
    %525 = vmatpush1.msra.mxu0 0.0
    %526 = vmatprep.subr.mxu0 0.0
    %527 = vmatpush1.msra.mxu0 0.0
    %528 = vmatprep.subr.mxu0 0.0
    %529 = vmatpush1.msra.mxu0 0.0
    %530 = vmatprep.subr.mxu0 0.0
    %531 = vmatpush1.msra.mxu0 0.0
    %532 = vmatprep.subr.mxu0 0.0
    %533 = vmatpush1.msra.mxu0 0.0
    %534 = vmatprep.subr.mxu0 0.0
    %535 = vmatpush1.msra.mxu0 0.0
    %536 = vmatprep.mubr.f32.mxu0 0.0
    %537 = vmatmul.mubr.f32.gmra.mrb[0].mxu0 %v269
    %v538 = vpop.f32.mrb[0].mxu0
    %v539 = vadd.f32 0.0, %v538
    %v540 = vpop.f32.mrb[0].mxu0
    %541 = vmatprep.mubr.f32.mxu0 0.0
    %542 = vmatmul.mubr.f32.gmra.mrb[0].mxu0 %v272
    %v543 = vpop.f32.mrb[0].mxu0
    %v544 = vadd.f32 0.0, %v543
    %v545 = vpop.f32.mrb[0].mxu0
    %546 = vmatprep.mubr.f32.mxu0 0.0
    %547 = vmatmul.mubr.f32.gmra.mrb[0].mxu0 %v275
    %v548 = vpop.f32.mrb[0].mxu0
    %v549 = vadd.f32 0.0, %v548
    %v550 = vpop.f32.mrb[0].mxu0
    %551 = vmatprep.mubr.f32.mxu0 0.0
    %552 = vmatmul.mubr.f32.gmra.mrb[0].mxu0 %v278
    %v553 = vpop.f32.mrb[0].mxu0
    %v554 = vadd.f32 0.0, %v553
    %v555 = vpop.f32.mrb[0].mxu0
    %556 = vdwg.mxu0
    %557 = vmatprep.subr.mxu0 0.0
    %558 = vmatpush1.msra.mxu0 %v470
    %559 = vmatprep.subr.mxu0 0.0
    %560 = vmatpush1.msra.mxu0 %v471
    %561 = vmatprep.subr.mxu0 0.0
    %562 = vmatpush1.msra.mxu0 0.0
    %563 = vmatprep.subr.mxu0 0.0
    %564 = vmatpush1.msra.mxu0 0.0
    %565 = vmatprep.subr.mxu0 0.0
    %566 = vmatpush1.msra.mxu0 0.0
    %567 = vmatprep.subr.mxu0 0.0
    %568 = vmatpush1.msra.mxu0 0.0
    %569 = vmatprep.subr.mxu0 0.0
    %570 = vmatpush1.msra.mxu0 0.0
    %571 = vmatprep.subr.mxu0 0.0
    %572 = vmatpush1.msra.mxu0 0.0
    %573 = vmatprep.subr.mxu0 0.0
    %574 = vmatpush1.msra.mxu0 0.0
    %575 = vmatprep.subr.mxu0 0.0
    %576 = vmatpush1.msra.mxu0 0.0
    %577 = vmatprep.subr.mxu0 0.0
    %578 = vmatpush1.msra.mxu0 0.0
    %579 = vmatprep.subr.mxu0 0.0
    %580 = vmatpush1.msra.mxu0 0.0
    %581 = vmatprep.subr.mxu0 0.0
    %582 = vmatpush1.msra.mxu0 0.0
    %583 = vmatprep.subr.mxu0 0.0
    %584 = vmatpush1.msra.mxu0 0.0
    %585 = vmatprep.subr.mxu0 0.0
    %586 = vmatpush1.msra.mxu0 0.0
    %587 = vmatprep.subr.mxu0 0.0
    %588 = vmatpush1.msra.mxu0 0.0
    %589 = vmatprep.subr.mxu0 0.0
    %590 = vmatpush1.msra.mxu0 0.0
    %591 = vmatprep.subr.mxu0 0.0
    %592 = vmatpush1.msra.mxu0 0.0
    %593 = vmatprep.subr.mxu0 0.0
    %594 = vmatpush1.msra.mxu0 0.0
    %595 = vmatprep.subr.mxu0 0.0
    %596 = vmatpush1.msra.mxu0 0.0
    %597 = vmatprep.subr.mxu0 0.0
    %598 = vmatpush1.msra.mxu0 0.0
    %599 = vmatprep.subr.mxu0 0.0
    %600 = vmatpush1.msra.mxu0 0.0
    %601 = vmatprep.subr.mxu0 0.0
    %602 = vmatpush1.msra.mxu0 0.0
    %603 = vmatprep.subr.mxu0 0.0
    %604 = vmatpush1.msra.mxu0 0.0
    %605 = vmatprep.subr.mxu0 0.0
    %606 = vmatpush1.msra.mxu0 0.0
    %607 = vmatprep.subr.mxu0 0.0
    %608 = vmatpush1.msra.mxu0 0.0
    %609 = vmatprep.subr.mxu0 0.0
    %610 = vmatpush1.msra.mxu0 0.0
    %611 = vmatprep.subr.mxu0 0.0
    %612 = vmatpush1.msra.mxu0 0.0
    %613 = vmatprep.subr.mxu0 0.0
    %614 = vmatpush1.msra.mxu0 0.0
    %615 = vmatprep.subr.mxu0 0.0
    %616 = vmatpush1.msra.mxu0 0.0
    %617 = vmatprep.subr.mxu0 0.0
    %618 = vmatpush1.msra.mxu0 0.0
    %619 = vmatprep.subr.mxu0 0.0
    %620 = vmatpush1.msra.mxu0 0.0
    %621 = vmatprep.mubr.f32.mxu0 0.0
    %622 = vmatmul.mubr.f32.gmra.mrb[0].mxu0 %v269
    %v623 = vpop.f32.mrb[0].mxu0
    %v624 = vadd.f32 0.0, %v623
    %v625 = vpop.f32.mrb[0].mxu0
    %626 = vmatprep.mubr.f32.mxu0 0.0
    %627 = vmatmul.mubr.f32.gmra.mrb[0].mxu0 %v272
    %v628 = vpop.f32.mrb[0].mxu0
    %v629 = vadd.f32 0.0, %v628
    %v630 = vpop.f32.mrb[0].mxu0
    %631 = vmatprep.mubr.f32.mxu0 0.0
    %632 = vmatmul.mubr.f32.gmra.mrb[0].mxu0 %v275
    %v633 = vpop.f32.mrb[0].mxu0
    %v634 = vadd.f32 0.0, %v633
    %v635 = vpop.f32.mrb[0].mxu0
    %636 = vmatprep.mubr.f32.mxu0 0.0
    %637 = vmatmul.mubr.f32.gmra.mrb[0].mxu0 %v278
    %v638 = vpop.f32.mrb[0].mxu0
    %v639 = vadd.f32 0.0, %v638
    %v640 = vpop.f32.mrb[0].mxu0
    %641 = vdwg.mxu0
    %v642 = vadd.f32 %v539, %v634
    %v643 = vadd.f32 %v544, %v639
    %v644 = vsub.f32 %v624, %v549
    %v645 = vsub.f32 %v629, %v554
    %646 = vmatprep.subr.mxu0 0.0
    %647 = vmatpush1.msra.mxu0 %v175
    %648 = vmatprep.subr.mxu0 0.0
    %649 = vmatpush1.msra.mxu0 %v180
    %650 = vmatprep.subr.mxu0 0.0
    %651 = vmatpush1.msra.mxu0 0.0
    %652 = vmatprep.subr.mxu0 0.0
    %653 = vmatpush1.msra.mxu0 0.0
    %654 = vmatprep.subr.mxu0 0.0
    %655 = vmatpush1.msra.mxu0 0.0
    %656 = vmatprep.subr.mxu0 0.0
    %657 = vmatpush1.msra.mxu0 0.0
    %658 = vmatprep.subr.mxu0 0.0
    %659 = vmatpush1.msra.mxu0 0.0
    %660 = vmatprep.subr.mxu0 0.0
    %661 = vmatpush1.msra.mxu0 0.0
    %662 = vmatprep.subr.mxu0 0.0
    %663 = vmatpush1.msra.mxu0 0.0
    %664 = vmatprep.subr.mxu0 0.0
    %665 = vmatpush1.msra.mxu0 0.0
    %666 = vmatprep.subr.mxu0 0.0
    %667 = vmatpush1.msra.mxu0 0.0
    %668 = vmatprep.subr.mxu0 0.0
    %669 = vmatpush1.msra.mxu0 0.0
    %670 = vmatprep.subr.mxu0 0.0
    %671 = vmatpush1.msra.mxu0 0.0
    %672 = vmatprep.subr.mxu0 0.0
    %673 = vmatpush1.msra.mxu0 0.0
    %674 = vmatprep.subr.mxu0 0.0
    %675 = vmatpush1.msra.mxu0 0.0
    %676 = vmatprep.subr.mxu0 0.0
    %677 = vmatpush1.msra.mxu0 0.0
    %678 = vmatprep.subr.mxu0 0.0
    %679 = vmatpush1.msra.mxu0 0.0
    %680 = vmatprep.subr.mxu0 0.0
    %681 = vmatpush1.msra.mxu0 0.0
    %682 = vmatprep.subr.mxu0 0.0
    %683 = vmatpush1.msra.mxu0 0.0
    %684 = vmatprep.subr.mxu0 0.0
    %685 = vmatpush1.msra.mxu0 0.0
    %686 = vmatprep.subr.mxu0 0.0
    %687 = vmatpush1.msra.mxu0 0.0
    %688 = vmatprep.subr.mxu0 0.0
    %689 = vmatpush1.msra.mxu0 0.0
    %690 = vmatprep.subr.mxu0 0.0
    %691 = vmatpush1.msra.mxu0 0.0
    %692 = vmatprep.subr.mxu0 0.0
    %693 = vmatpush1.msra.mxu0 0.0
    %694 = vmatprep.subr.mxu0 0.0
    %695 = vmatpush1.msra.mxu0 0.0
    %696 = vmatprep.subr.mxu0 0.0
    %697 = vmatpush1.msra.mxu0 0.0
    %698 = vmatprep.subr.mxu0 0.0
    %699 = vmatpush1.msra.mxu0 0.0
    %700 = vmatprep.subr.mxu0 0.0
    %701 = vmatpush1.msra.mxu0 0.0
    %702 = vmatprep.subr.mxu0 0.0
    %703 = vmatpush1.msra.mxu0 0.0
    %704 = vmatprep.subr.mxu0 0.0
    %705 = vmatpush1.msra.mxu0 0.0
    %706 = vmatprep.subr.mxu0 0.0
    %707 = vmatpush1.msra.mxu0 0.0
    %708 = vmatprep.subr.mxu0 0.0
    %709 = vmatpush1.msra.mxu0 0.0
    %710 = vmatprep.mubr.f32.mxu0 0.0
    %711 = vmatmul.mubr.f32.gmra.mrb[0].mxu0 %v269
    %v712 = vpop.f32.mrb[0].mxu0
    %v713 = vadd.f32 0.0, %v712
    %v714 = vpop.f32.mrb[0].mxu0
    %715 = vmatprep.mubr.f32.mxu0 0.0
    %716 = vmatmul.mubr.f32.gmra.mrb[0].mxu0 %v272
    %v717 = vpop.f32.mrb[0].mxu0
    %v718 = vadd.f32 0.0, %v717
    %v719 = vpop.f32.mrb[0].mxu0
    %720 = vmatprep.mubr.f32.mxu0 0.0
    %721 = vmatmul.mubr.f32.gmra.mrb[0].mxu0 %v275
    %v722 = vpop.f32.mrb[0].mxu0
    %v723 = vadd.f32 0.0, %v722
    %v724 = vpop.f32.mrb[0].mxu0
    %725 = vmatprep.mubr.f32.mxu0 0.0
    %726 = vmatmul.mubr.f32.gmra.mrb[0].mxu0 %v278
    %v727 = vpop.f32.mrb[0].mxu0
    %v728 = vadd.f32 0.0, %v727
    %v729 = vpop.f32.mrb[0].mxu0
    %730 = vdwg.mxu0
    %731 = vmatprep.subr.mxu0 0.0
    %732 = vmatpush1.msra.mxu0 %v260
    %733 = vmatprep.subr.mxu0 0.0
    %734 = vmatpush1.msra.mxu0 %v265
    %735 = vmatprep.subr.mxu0 0.0
    %736 = vmatpush1.msra.mxu0 0.0
    %737 = vmatprep.subr.mxu0 0.0
    %738 = vmatpush1.msra.mxu0 0.0
    %739 = vmatprep.subr.mxu0 0.0
    %740 = vmatpush1.msra.mxu0 0.0
    %741 = vmatprep.subr.mxu0 0.0
    %742 = vmatpush1.msra.mxu0 0.0
    %743 = vmatprep.subr.mxu0 0.0
    %744 = vmatpush1.msra.mxu0 0.0
    %745 = vmatprep.subr.mxu0 0.0
    %746 = vmatpush1.msra.mxu0 0.0
    %747 = vmatprep.subr.mxu0 0.0
    %748 = vmatpush1.msra.mxu0 0.0
    %749 = vmatprep.subr.mxu0 0.0
    %750 = vmatpush1.msra.mxu0 0.0
    %751 = vmatprep.subr.mxu0 0.0
    %752 = vmatpush1.msra.mxu0 0.0
    %753 = vmatprep.subr.mxu0 0.0
    %754 = vmatpush1.msra.mxu0 0.0
    %755 = vmatprep.subr.mxu0 0.0
    %756 = vmatpush1.msra.mxu0 0.0
    %757 = vmatprep.subr.mxu0 0.0
    %758 = vmatpush1.msra.mxu0 0.0
    %759 = vmatprep.subr.mxu0 0.0
    %760 = vmatpush1.msra.mxu0 0.0
    %761 = vmatprep.subr.mxu0 0.0
    %762 = vmatpush1.msra.mxu0 0.0
    %763 = vmatprep.subr.mxu0 0.0
    %764 = vmatpush1.msra.mxu0 0.0
    %765 = vmatprep.subr.mxu0 0.0
    %766 = vmatpush1.msra.mxu0 0.0
    %767 = vmatprep.subr.mxu0 0.0
    %768 = vmatpush1.msra.mxu0 0.0
    %769 = vmatprep.subr.mxu0 0.0
    %770 = vmatpush1.msra.mxu0 0.0
    %771 = vmatprep.subr.mxu0 0.0
    %772 = vmatpush1.msra.mxu0 0.0
    %773 = vmatprep.subr.mxu0 0.0
    %774 = vmatpush1.msra.mxu0 0.0
    %775 = vmatprep.subr.mxu0 0.0
    %776 = vmatpush1.msra.mxu0 0.0
    %777 = vmatprep.subr.mxu0 0.0
    %778 = vmatpush1.msra.mxu0 0.0
    %779 = vmatprep.subr.mxu0 0.0
    %780 = vmatpush1.msra.mxu0 0.0
    %781 = vmatprep.subr.mxu0 0.0
    %782 = vmatpush1.msra.mxu0 0.0
    %783 = vmatprep.subr.mxu0 0.0
    %784 = vmatpush1.msra.mxu0 0.0
    %785 = vmatprep.subr.mxu0 0.0
    %786 = vmatpush1.msra.mxu0 0.0
    %787 = vmatprep.subr.mxu0 0.0
    %788 = vmatpush1.msra.mxu0 0.0
    %789 = vmatprep.subr.mxu0 0.0
    %790 = vmatpush1.msra.mxu0 0.0
    %791 = vmatprep.subr.mxu0 0.0
    %792 = vmatpush1.msra.mxu0 0.0
    %793 = vmatprep.subr.mxu0 0.0
    %794 = vmatpush1.msra.mxu0 0.0
    %795 = vmatprep.mubr.f32.mxu0 0.0
    %796 = vmatmul.mubr.f32.gmra.mrb[0].mxu0 %v269
    %v797 = vpop.f32.mrb[0].mxu0
    %v798 = vadd.f32 0.0, %v797
    %v799 = vpop.f32.mrb[0].mxu0
    %800 = vmatprep.mubr.f32.mxu0 0.0
    %801 = vmatmul.mubr.f32.gmra.mrb[0].mxu0 %v272
    %v802 = vpop.f32.mrb[0].mxu0
    %v803 = vadd.f32 0.0, %v802
    %v804 = vpop.f32.mrb[0].mxu0
    %805 = vmatprep.mubr.f32.mxu0 0.0
    %806 = vmatmul.mubr.f32.gmra.mrb[0].mxu0 %v275
    %v807 = vpop.f32.mrb[0].mxu0
    %v808 = vadd.f32 0.0, %v807
    %v809 = vpop.f32.mrb[0].mxu0
    %810 = vmatprep.mubr.f32.mxu0 0.0
    %811 = vmatmul.mubr.f32.gmra.mrb[0].mxu0 %v278
    %v812 = vpop.f32.mrb[0].mxu0
    %v813 = vadd.f32 0.0, %v812
    %v814 = vpop.f32.mrb[0].mxu0
    %815 = vdwg.mxu0
    %v816 = vsub.f32 %v713, %v808
    %v817 = vsub.f32 %v718, %v813
    %v818 = vadd.f32 %v798, %v723
    %v819 = vadd.f32 %v803, %v728
    %v820 = vld [vmem:[%s3 + $0x10] sm:$0xff]
    %v821 = vld [vmem:[%s3 + $0x18] sm:$0xff]
    %v822 = vld [vmem:[%s1 + $0x10] sm:$0xff]
    %v823 = vld [vmem:[%s1 + $0x18] sm:$0xff]
    %v824 = vsub.f32 %v822, %v816
    %v825 = vsub.f32 %v823, %v817
    %v826 = vmul.f32 %v820, %v824
    %v827 = vmul.f32 %v821, %v825
    %v828 = vadd.f32 %v816, %v826
    %v829 = vadd.f32 %v817, %v827
    %v830 = vld [vmem:[%s2 + $0x10] sm:$0xff]
    %v831 = vld [vmem:[%s2 + $0x18] sm:$0xff]
    %v832 = vsub.f32 %v830, %v818
    %v833 = vsub.f32 %v831, %v819
    %v834 = vmul.f32 %v820, %v832
    %v835 = vmul.f32 %v821, %v833
    %v836 = vadd.f32 %v818, %v834
    %v837 = vadd.f32 %v819, %v835
    %838 = vmatprep.subr.mxu0 0.0
    %839 = vmatpush1.msra.mxu0 %v828
    %840 = vmatprep.subr.mxu0 0.0
    %841 = vmatpush1.msra.mxu0 %v829
    %842 = vmatprep.subr.mxu0 0.0
    %843 = vmatpush1.msra.mxu0 0.0
    %844 = vmatprep.subr.mxu0 0.0
    %845 = vmatpush1.msra.mxu0 0.0
    %846 = vmatprep.subr.mxu0 0.0
    %847 = vmatpush1.msra.mxu0 0.0
    %848 = vmatprep.subr.mxu0 0.0
    %849 = vmatpush1.msra.mxu0 0.0
    %850 = vmatprep.subr.mxu0 0.0
    %851 = vmatpush1.msra.mxu0 0.0
    %852 = vmatprep.subr.mxu0 0.0
    %853 = vmatpush1.msra.mxu0 0.0
    %854 = vmatprep.subr.mxu0 0.0
    %855 = vmatpush1.msra.mxu0 0.0
    %856 = vmatprep.subr.mxu0 0.0
    %857 = vmatpush1.msra.mxu0 0.0
    %858 = vmatprep.subr.mxu0 0.0
    %859 = vmatpush1.msra.mxu0 0.0
    %860 = vmatprep.subr.mxu0 0.0
    %861 = vmatpush1.msra.mxu0 0.0
    %862 = vmatprep.subr.mxu0 0.0
    %863 = vmatpush1.msra.mxu0 0.0
    %864 = vmatprep.subr.mxu0 0.0
    %865 = vmatpush1.msra.mxu0 0.0
    %866 = vmatprep.subr.mxu0 0.0
    %867 = vmatpush1.msra.mxu0 0.0
    %868 = vmatprep.subr.mxu0 0.0
    %869 = vmatpush1.msra.mxu0 0.0
    %870 = vmatprep.subr.mxu0 0.0
    %871 = vmatpush1.msra.mxu0 0.0
    %872 = vmatprep.subr.mxu0 0.0
    %873 = vmatpush1.msra.mxu0 0.0
    %874 = vmatprep.subr.mxu0 0.0
    %875 = vmatpush1.msra.mxu0 0.0
    %876 = vmatprep.subr.mxu0 0.0
    %877 = vmatpush1.msra.mxu0 0.0
    %878 = vmatprep.subr.mxu0 0.0
    %879 = vmatpush1.msra.mxu0 0.0
    %880 = vmatprep.subr.mxu0 0.0
    %881 = vmatpush1.msra.mxu0 0.0
    %882 = vmatprep.subr.mxu0 0.0
    %883 = vmatpush1.msra.mxu0 0.0
    %884 = vmatprep.subr.mxu0 0.0
    %885 = vmatpush1.msra.mxu0 0.0
    %886 = vmatprep.subr.mxu0 0.0
    %887 = vmatpush1.msra.mxu0 0.0
    %888 = vmatprep.subr.mxu0 0.0
    %889 = vmatpush1.msra.mxu0 0.0
    %890 = vmatprep.subr.mxu0 0.0
    %891 = vmatpush1.msra.mxu0 0.0
    %892 = vmatprep.subr.mxu0 0.0
    %893 = vmatpush1.msra.mxu0 0.0
    %894 = vmatprep.subr.mxu0 0.0
    %895 = vmatpush1.msra.mxu0 0.0
    %896 = vmatprep.subr.mxu0 0.0
    %897 = vmatpush1.msra.mxu0 0.0
    %898 = vmatprep.subr.mxu0 0.0
    %899 = vmatpush1.msra.mxu0 0.0
    %900 = vmatprep.subr.mxu0 0.0
    %901 = vmatpush1.msra.mxu0 0.0
    %902 = vmatprep.mubr.f32.mxu0 0.0
    %903 = vmatmul.mubr.f32.gmra.mrb[0].mxu0 %v269
    %v904 = vpop.f32.mrb[0].mxu0
    %v905 = vadd.f32 0.0, %v904
    %v906 = vpop.f32.mrb[0].mxu0
    %907 = vmatprep.mubr.f32.mxu0 0.0
    %908 = vmatmul.mubr.f32.gmra.mrb[0].mxu0 %v272
    %v909 = vpop.f32.mrb[0].mxu0
    %v910 = vadd.f32 0.0, %v909
    %v911 = vpop.f32.mrb[0].mxu0
    %912 = vmatprep.mubr.f32.mxu0 0.0
    %913 = vmatmul.mubr.f32.gmra.mrb[0].mxu0 %v275
    %v914 = vpop.f32.mrb[0].mxu0
    %v915 = vadd.f32 0.0, %v914
    %v916 = vpop.f32.mrb[0].mxu0
    %917 = vmatprep.mubr.f32.mxu0 0.0
    %918 = vmatmul.mubr.f32.gmra.mrb[0].mxu0 %v278
    %v919 = vpop.f32.mrb[0].mxu0
    %v920 = vadd.f32 0.0, %v919
    %v921 = vpop.f32.mrb[0].mxu0
    %922 = vdwg.mxu0
    %923 = vmatprep.subr.mxu0 0.0
    %924 = vmatpush1.msra.mxu0 %v836
    %925 = vmatprep.subr.mxu0 0.0
    %926 = vmatpush1.msra.mxu0 %v837
    %927 = vmatprep.subr.mxu0 0.0
    %928 = vmatpush1.msra.mxu0 0.0
    %929 = vmatprep.subr.mxu0 0.0
    %930 = vmatpush1.msra.mxu0 0.0
    %931 = vmatprep.subr.mxu0 0.0
    %932 = vmatpush1.msra.mxu0 0.0
    %933 = vmatprep.subr.mxu0 0.0
    %934 = vmatpush1.msra.mxu0 0.0
    %935 = vmatprep.subr.mxu0 0.0
    %936 = vmatpush1.msra.mxu0 0.0
    %937 = vmatprep.subr.mxu0 0.0
    %938 = vmatpush1.msra.mxu0 0.0
    %939 = vmatprep.subr.mxu0 0.0
    %940 = vmatpush1.msra.mxu0 0.0
    %941 = vmatprep.subr.mxu0 0.0
    %942 = vmatpush1.msra.mxu0 0.0
    %943 = vmatprep.subr.mxu0 0.0
    %944 = vmatpush1.msra.mxu0 0.0
    %945 = vmatprep.subr.mxu0 0.0
    %946 = vmatpush1.msra.mxu0 0.0
    %947 = vmatprep.subr.mxu0 0.0
    %948 = vmatpush1.msra.mxu0 0.0
    %949 = vmatprep.subr.mxu0 0.0
    %950 = vmatpush1.msra.mxu0 0.0
    %951 = vmatprep.subr.mxu0 0.0
    %952 = vmatpush1.msra.mxu0 0.0
    %953 = vmatprep.subr.mxu0 0.0
    %954 = vmatpush1.msra.mxu0 0.0
    %955 = vmatprep.subr.mxu0 0.0
    %956 = vmatpush1.msra.mxu0 0.0
    %957 = vmatprep.subr.mxu0 0.0
    %958 = vmatpush1.msra.mxu0 0.0
    %959 = vmatprep.subr.mxu0 0.0
    %960 = vmatpush1.msra.mxu0 0.0
    %961 = vmatprep.subr.mxu0 0.0
    %962 = vmatpush1.msra.mxu0 0.0
    %963 = vmatprep.subr.mxu0 0.0
    %964 = vmatpush1.msra.mxu0 0.0
    %965 = vmatprep.subr.mxu0 0.0
    %966 = vmatpush1.msra.mxu0 0.0
    %967 = vmatprep.subr.mxu0 0.0
    %968 = vmatpush1.msra.mxu0 0.0
    %969 = vmatprep.subr.mxu0 0.0
    %970 = vmatpush1.msra.mxu0 0.0
    %971 = vmatprep.subr.mxu0 0.0
    %972 = vmatpush1.msra.mxu0 0.0
    %973 = vmatprep.subr.mxu0 0.0
    %974 = vmatpush1.msra.mxu0 0.0
    %975 = vmatprep.subr.mxu0 0.0
    %976 = vmatpush1.msra.mxu0 0.0
    %977 = vmatprep.subr.mxu0 0.0
    %978 = vmatpush1.msra.mxu0 0.0
    %979 = vmatprep.subr.mxu0 0.0
    %980 = vmatpush1.msra.mxu0 0.0
    %981 = vmatprep.subr.mxu0 0.0
    %982 = vmatpush1.msra.mxu0 0.0
    %983 = vmatprep.subr.mxu0 0.0
    %984 = vmatpush1.msra.mxu0 0.0
    %985 = vmatprep.subr.mxu0 0.0
    %986 = vmatpush1.msra.mxu0 0.0
    %987 = vmatprep.mubr.f32.mxu0 0.0
    %988 = vmatmul.mubr.f32.gmra.mrb[0].mxu0 %v269
    %v989 = vpop.f32.mrb[0].mxu0
    %v990 = vadd.f32 0.0, %v989
    %v991 = vpop.f32.mrb[0].mxu0
    %992 = vmatprep.mubr.f32.mxu0 0.0
    %993 = vmatmul.mubr.f32.gmra.mrb[0].mxu0 %v272
    %v994 = vpop.f32.mrb[0].mxu0
    %v995 = vadd.f32 0.0, %v994
    %v996 = vpop.f32.mrb[0].mxu0
    %997 = vmatprep.mubr.f32.mxu0 0.0
    %998 = vmatmul.mubr.f32.gmra.mrb[0].mxu0 %v275
    %v999 = vpop.f32.mrb[0].mxu0
    %v1000 = vadd.f32 0.0, %v999
    %v1001 = vpop.f32.mrb[0].mxu0
    %1002 = vmatprep.mubr.f32.mxu0 0.0
    %1003 = vmatmul.mubr.f32.gmra.mrb[0].mxu0 %v278
    %v1004 = vpop.f32.mrb[0].mxu0
    %v1005 = vadd.f32 0.0, %v1004
    %v1006 = vpop.f32.mrb[0].mxu0
    %1007 = vdwg.mxu0
    %v1008 = vadd.f32 %v905, %v1000
    %v1009 = vadd.f32 %v910, %v1005
    %v1010 = vsub.f32 %v990, %v915
    %v1011 = vsub.f32 %v995, %v920
    %v1013 = vsel %vm85, %v644, 0
    %v1016 = vsel %vm85, %v645, 0
    %v1019 = vsel %vm85, %v1010, 0
    %v1022 = vsel %vm85, %v1011, 0
    %1024 = vmatprep.subr.mxu0 0.0
    %1025 = vmatpush1.msra.mxu0 %v78
    %1026 = vmatprep.subr.mxu0 0.0
    %1027 = vmatpush1.msra.mxu0 %v79
    %1028 = vmatprep.subr.mxu0 0.0
    %1029 = vmatpush1.msra.mxu0 0.0
    %1030 = vmatprep.subr.mxu0 0.0
    %1031 = vmatpush1.msra.mxu0 0.0
    %1032 = vmatprep.subr.mxu0 0.0
    %1033 = vmatpush1.msra.mxu0 0.0
    %1034 = vmatprep.subr.mxu0 0.0
    %1035 = vmatpush1.msra.mxu0 0.0
    %1036 = vmatprep.subr.mxu0 0.0
    %1037 = vmatpush1.msra.mxu0 0.0
    %1038 = vmatprep.subr.mxu0 0.0
    %1039 = vmatpush1.msra.mxu0 0.0
    %1040 = vmatprep.subr.mxu0 0.0
    %1041 = vmatpush1.msra.mxu0 0.0
    %1042 = vmatprep.subr.mxu0 0.0
    %1043 = vmatpush1.msra.mxu0 0.0
    %1044 = vmatprep.subr.mxu0 0.0
    %1045 = vmatpush1.msra.mxu0 0.0
    %1046 = vmatprep.subr.mxu0 0.0
    %1047 = vmatpush1.msra.mxu0 0.0
    %1048 = vmatprep.subr.mxu0 0.0
    %1049 = vmatpush1.msra.mxu0 0.0
    %1050 = vmatprep.subr.mxu0 0.0
    %1051 = vmatpush1.msra.mxu0 0.0
    %1052 = vmatprep.subr.mxu0 0.0
    %1053 = vmatpush1.msra.mxu0 0.0
    %1054 = vmatprep.subr.mxu0 0.0
    %1055 = vmatpush1.msra.mxu0 0.0
    %1056 = vmatprep.subr.mxu0 0.0
    %1057 = vmatpush1.msra.mxu0 0.0
    %1058 = vmatprep.subr.mxu0 0.0
    %1059 = vmatpush1.msra.mxu0 0.0
    %1060 = vmatprep.subr.mxu0 0.0
    %1061 = vmatpush1.msra.mxu0 0.0
    %1062 = vmatprep.subr.mxu0 0.0
    %1063 = vmatpush1.msra.mxu0 0.0
    %1064 = vmatprep.subr.mxu0 0.0
    %1065 = vmatpush1.msra.mxu0 0.0
    %1066 = vmatprep.subr.mxu0 0.0
    %1067 = vmatpush1.msra.mxu0 0.0
    %1068 = vmatprep.subr.mxu0 0.0
    %1069 = vmatpush1.msra.mxu0 0.0
    %1070 = vmatprep.subr.mxu0 0.0
    %1071 = vmatpush1.msra.mxu0 0.0
    %1072 = vmatprep.subr.mxu0 0.0
    %1073 = vmatpush1.msra.mxu0 0.0
    %1074 = vmatprep.subr.mxu0 0.0
    %1075 = vmatpush1.msra.mxu0 0.0
    %1076 = vmatprep.subr.mxu0 0.0
    %1077 = vmatpush1.msra.mxu0 0.0
    %1078 = vmatprep.subr.mxu0 0.0
    %1079 = vmatpush1.msra.mxu0 0.0
    %1080 = vmatprep.subr.mxu0 0.0
    %1081 = vmatpush1.msra.mxu0 0.0
    %1082 = vmatprep.subr.mxu0 0.0
    %1083 = vmatpush1.msra.mxu0 0.0
    %1084 = vmatprep.subr.mxu0 0.0
    %1085 = vmatpush1.msra.mxu0 0.0
    %1086 = vmatprep.subr.mxu0 0.0
    %1087 = vmatpush1.msra.mxu0 0.0
    %1088 = vmatprep.mubr.f32.mxu0 0.0
    %1089 = vmatmul.mubr.f32.gmra.mrb[0].mxu0 %v1013
    %v1090 = vpop.f32.mrb[0].mxu0
    %v1091 = vadd.f32 0.0, %v1090
    %v1092 = vpop.f32.mrb[0].mxu0
    %1093 = vmatprep.mubr.f32.mxu0 0.0
    %1094 = vmatmul.mubr.f32.gmra.mrb[0].mxu0 %v1016
    %v1095 = vpop.f32.mrb[0].mxu0
    %v1096 = vadd.f32 0.0, %v1095
    %v1097 = vpop.f32.mrb[0].mxu0
    %1098 = vmatprep.mubr.f32.mxu0 0.0
    %1099 = vmatmul.mubr.f32.gmra.mrb[0].mxu0 %v1019
    %v1100 = vpop.f32.mrb[0].mxu0
    %v1101 = vadd.f32 0.0, %v1100
    %v1102 = vpop.f32.mrb[0].mxu0
    %1103 = vmatprep.mubr.f32.mxu0 0.0
    %1104 = vmatmul.mubr.f32.gmra.mrb[0].mxu0 %v1022
    %v1105 = vpop.f32.mrb[0].mxu0
    %v1106 = vadd.f32 0.0, %v1105
    %v1107 = vpop.f32.mrb[0].mxu0
    %1108 = vdwg.mxu0
    %v1110 = vsel %vm85, %v642, 0
    %v1113 = vsel %vm85, %v643, 0
    %v1116 = vsel %vm85, %v1008, 0
    %v1119 = vsel %vm85, %v1009, 0
    %1121 = vmatprep.subr.mxu0 0.0
    %1122 = vmatpush1.msra.mxu0 %v76
    %1123 = vmatprep.subr.mxu0 0.0
    %1124 = vmatpush1.msra.mxu0 %v77
    %1125 = vmatprep.subr.mxu0 0.0
    %1126 = vmatpush1.msra.mxu0 0.0
    %1127 = vmatprep.subr.mxu0 0.0
    %1128 = vmatpush1.msra.mxu0 0.0
    %1129 = vmatprep.subr.mxu0 0.0
    %1130 = vmatpush1.msra.mxu0 0.0
    %1131 = vmatprep.subr.mxu0 0.0
    %1132 = vmatpush1.msra.mxu0 0.0
    %1133 = vmatprep.subr.mxu0 0.0
    %1134 = vmatpush1.msra.mxu0 0.0
    %1135 = vmatprep.subr.mxu0 0.0
    %1136 = vmatpush1.msra.mxu0 0.0
    %1137 = vmatprep.subr.mxu0 0.0
    %1138 = vmatpush1.msra.mxu0 0.0
    %1139 = vmatprep.subr.mxu0 0.0
    %1140 = vmatpush1.msra.mxu0 0.0
    %1141 = vmatprep.subr.mxu0 0.0
    %1142 = vmatpush1.msra.mxu0 0.0
    %1143 = vmatprep.subr.mxu0 0.0
    %1144 = vmatpush1.msra.mxu0 0.0
    %1145 = vmatprep.subr.mxu0 0.0
    %1146 = vmatpush1.msra.mxu0 0.0
    %1147 = vmatprep.subr.mxu0 0.0
    %1148 = vmatpush1.msra.mxu0 0.0
    %1149 = vmatprep.subr.mxu0 0.0
    %1150 = vmatpush1.msra.mxu0 0.0
    %1151 = vmatprep.subr.mxu0 0.0
    %1152 = vmatpush1.msra.mxu0 0.0
    %1153 = vmatprep.subr.mxu0 0.0
    %1154 = vmatpush1.msra.mxu0 0.0
    %1155 = vmatprep.subr.mxu0 0.0
    %1156 = vmatpush1.msra.mxu0 0.0
    %1157 = vmatprep.subr.mxu0 0.0
    %1158 = vmatpush1.msra.mxu0 0.0
    %1159 = vmatprep.subr.mxu0 0.0
    %1160 = vmatpush1.msra.mxu0 0.0
    %1161 = vmatprep.subr.mxu0 0.0
    %1162 = vmatpush1.msra.mxu0 0.0
    %1163 = vmatprep.subr.mxu0 0.0
    %1164 = vmatpush1.msra.mxu0 0.0
    %1165 = vmatprep.subr.mxu0 0.0
    %1166 = vmatpush1.msra.mxu0 0.0
    %1167 = vmatprep.subr.mxu0 0.0
    %1168 = vmatpush1.msra.mxu0 0.0
    %1169 = vmatprep.subr.mxu0 0.0
    %1170 = vmatpush1.msra.mxu0 0.0
    %1171 = vmatprep.subr.mxu0 0.0
    %1172 = vmatpush1.msra.mxu0 0.0
    %1173 = vmatprep.subr.mxu0 0.0
    %1174 = vmatpush1.msra.mxu0 0.0
    %1175 = vmatprep.subr.mxu0 0.0
    %1176 = vmatpush1.msra.mxu0 0.0
    %1177 = vmatprep.subr.mxu0 0.0
    %1178 = vmatpush1.msra.mxu0 0.0
    %1179 = vmatprep.subr.mxu0 0.0
    %1180 = vmatpush1.msra.mxu0 0.0
    %1181 = vmatprep.subr.mxu0 0.0
    %1182 = vmatpush1.msra.mxu0 0.0
    %1183 = vmatprep.subr.mxu0 0.0
    %1184 = vmatpush1.msra.mxu0 0.0
    %1185 = vmatprep.mubr.f32.mxu0 0.0
    %1186 = vmatmul.mubr.f32.gmra.mrb[0].mxu0 %v1110
    %v1187 = vpop.f32.mrb[0].mxu0
    %v1188 = vadd.f32 %v1091, %v1187
    %v1189 = vpop.f32.mrb[0].mxu0
    %1190 = vmatprep.mubr.f32.mxu0 0.0
    %1191 = vmatmul.mubr.f32.gmra.mrb[0].mxu0 %v1113
    %v1192 = vpop.f32.mrb[0].mxu0
    %v1193 = vadd.f32 %v1096, %v1192
    %v1194 = vpop.f32.mrb[0].mxu0
    %1195 = vmatprep.mubr.f32.mxu0 0.0
    %1196 = vmatmul.mubr.f32.gmra.mrb[0].mxu0 %v1116
    %v1197 = vpop.f32.mrb[0].mxu0
    %v1198 = vadd.f32 %v1101, %v1197
    %v1199 = vpop.f32.mrb[0].mxu0
    %1200 = vmatprep.mubr.f32.mxu0 0.0
    %1201 = vmatmul.mubr.f32.gmra.mrb[0].mxu0 %v1119
    %v1202 = vpop.f32.mrb[0].mxu0
    %v1203 = vadd.f32 %v1106, %v1202
    %v1204 = vpop.f32.mrb[0].mxu0
    %1205 = vdwg.mxu0
    %1206 = vst.msk [vmem:[%s7] sm:$0xff] %vm85, %v1188
    %1207 = vst.msk [vmem:[%s7 + $0x8] sm:$0xff] %vm85, %v1193
    %1208 = vst.msk [vmem:[%s7 + $0x10] sm:$0xff] %vm85, %v1198
    %1209 = vst.msk [vmem:[%s7 + $0x18] sm:$0xff] %vm85, %v1203
    // Predicated region
    $region68: #{tpu_custom_call.1} parent=1 // pred_check
      _
    $region69: #{tpu_custom_call.1} parent=1 // pred_check_branch
      %1211 = sbr.rel (0) target = $region71
    $region70: #{tpu_custom_call.1} parent=1 // pred_region
      _
    $region71: #{tpu_custom_call.1} parent=1 // pred_fallthru
      _
    // Predicated region
    $region72: #{tpu_custom_call.1} parent=1 // pred_check
      _
    $region73: #{tpu_custom_call.1} parent=1 // pred_check_branch
      %1213 = sbr.rel (0) target = $region75
    $region74: #{tpu_custom_call.1} parent=1 // pred_region
      _
    $region75: #{tpu_custom_call.1} parent=1 // pred_fallthru
      _

</llo_original>
